<compile_context>
chip_gen: v6e
topology: v6e:2x2x1
jax: 0.10.0
libtpu: 0.0.40
codegen_flags: <defaults>
</compile_context>

<pallas_src>
import functools

import jax
import jax.numpy as jnp
from jax.experimental import pallas as pl
from jax.experimental.pallas import tpu as pltpu


WEIGHT_DTYPE = jnp.bfloat16          # numerics change endorsed by perf review
LAYER_SIZES = (64, 128, 512, 1024, 2048 * 3)


# ----------------------------------------------------------------------------
# Stage 1: layers 0..3 (z -> 64 -> 128 -> 512 -> 1024), one shot, VMEM-resident
# ----------------------------------------------------------------------------
def _early_mlp_kernel(x_ref,
                      w0_ref, b0_ref, w1_ref, b1_ref,
                      w2_ref, b2_ref, w3_ref, b3_ref,
                      h_ref, *, use_bias):
    def dense_relu(h, w_ref, b_ref):
        acc = jnp.dot(h.astype(w_ref.dtype), w_ref[...],
                      preferred_element_type=jnp.float32)
        if use_bias:
            acc = acc + b_ref[...]           # (1, N) broadcasts over batch rows
        return jnp.maximum(acc, 0.0)

    h = x_ref[...].astype(jnp.float32)
    h = dense_relu(h, w0_ref, b0_ref)
    h = dense_relu(h, w1_ref, b1_ref)
    h = dense_relu(h, w2_ref, b2_ref)
    h = dense_relu(h, w3_ref, b3_ref)        # (B, 1024) f32
    h_ref[...] = h


# ----------------------------------------------------------------------------
# Stage 2: final 1024 -> 6144 layer, streaming contiguous column slabs of w4
# ----------------------------------------------------------------------------
def _final_layer_kernel(h_ref, w4_ref, b4_ref, o_ref, *, use_bias):
    acc = jnp.dot(h_ref[...].astype(w4_ref.dtype), w4_ref[...],
                  preferred_element_type=jnp.float32)
    if use_bias:
        acc = acc + b4_ref[...]
    o_ref[...] = acc.astype(o_ref.dtype)


def _pick_tile_n(n_out):
    """Per-generation output-column tile for the final layer (n_out = 6144)."""
    try:
        kind = jax.devices()[0].device_kind.lower()
    except Exception:
        kind = ""
    if "v7" in kind or "7x" in kind:
        tn = 1536        # 4 grid steps -> even 2-steps-per-TC megacore split
    elif "v5" in kind or "v6" in kind:
        tn = 2048        # 3 grid steps -> fewer per-step overheads (single TC)
    else:
        tn = 1024
    while n_out % tn != 0:                   # safety for unexpected widths
        tn //= 2
    return tn


def generator_forward(x, params, use_bias, *, tile_n=None):
    """x: (B, z) or (B, z, 1, 1); returns (B, 3, 2048)."""
    # Mirror PyTorch input.squeeze() for the standard (B, z, 1, 1) latent
    # without jnp.squeeze's risk of collapsing the batch/z axes when == 1.
    if x.ndim > 2:
        x = x.reshape(x.shape[0], -1)
    elif x.ndim == 1:
        x = x[None, :]
    x = x.astype(jnp.float32)
    B = x.shape[0]

    (w0, b0), (w1, b1), (w2, b2), (w3, b3), (w4, b4) = params
    K4, N4 = w4.shape                        # (1024, 6144)
    tn = tile_n if tile_n is not None else _pick_tile_n(N4)
    assert N4 % tn == 0, (N4, tn)
    G = N4 // tn

    # Biases as (1, N) 2-D rows for clean VMEM layout / broadcast.
    b0r, b1r, b2r, b3r, b4r = (b.reshape(1, -1) for b in (b0, b1, b2, b3, b4))

    # ---- stage 1: early chain, computed exactly once -----------------------
    h = pl.pallas_call(
        functools.partial(_early_mlp_kernel, use_bias=use_bias),
        out_shape=jax.ShapeDtypeStruct((B, K4), jnp.float32),
    )(x, w0, b0r, w1, b1r, w2, b2r, w3, b3r)

    # ---- stage 2: streamed final layer --------------------------------------
    # Pre-block w4 in HBM as (G, K4, tn): each grid step DMAs one contiguous
    # slab instead of a strided column slice of (1024, 6144).
    # TODO(synk): in a real model, do this re-layout once at parameter init.
    w4_blocked = jnp.transpose(w4.reshape(K4, G, tn), (1, 0, 2))

    flops = 2 * B * K4 * N4
    bytes_accessed = int(
        w4_blocked.size * jnp.dtype(w4_blocked.dtype).itemsize   # weight stream
        + h.size * 4 + b4r.size * 4 + B * N4 * 4                 # acts/bias/out
    )

    out = pl.pallas_call(
        functools.partial(_final_layer_kernel, use_bias=use_bias),
        out_shape=jax.ShapeDtypeStruct((B, N4), jnp.float32),
        grid_spec=pltpu.PrefetchScalarGridSpec(
            num_scalar_prefetch=0,
            grid=(G,),
            in_specs=[
                pl.BlockSpec((B, K4), lambda j: (0, 0)),            # h (tiny, resident)
                pl.BlockSpec((None, K4, tn), lambda j: (j, 0, 0)),  # contiguous w4 slab
                pl.BlockSpec((1, tn), lambda j: (0, j)),            # bias tile
            ],
            out_specs=pl.BlockSpec((B, tn), lambda j: (0, j)),
        ),
        compiler_params=pltpu.CompilerParams(
            dimension_semantics=("parallel",)),
        cost_estimate=pl.CostEstimate(
            flops=flops, transcendentals=0, bytes_accessed=bytes_accessed),
    )(h, w4_blocked, b4r)

    return out.reshape(-1, 3, 2048)


# ----------------------------------------------------------------------------
# Parameter construction (deterministic, PyTorch-like uniform(-1/sqrt(fan_in)))
# ----------------------------------------------------------------------------
def make_params(key, z_size, use_bias):
    sizes = [z_size] + list(LAYER_SIZES)
    params = []
    for i in range(len(sizes) - 1):
        fan_in, fan_out = sizes[i], sizes[i + 1]
        key, kw, kb = jax.random.split(key, 3)
        bound = 1.0 / jnp.sqrt(jnp.float32(fan_in))
        w = jax.random.uniform(
            kw, (fan_in, fan_out), jnp.float32, minval=-bound, maxval=bound
        ).astype(WEIGHT_DTYPE)
        if use_bias:
            b = jax.random.uniform(
                kb, (fan_out,), jnp.float32, minval=-bound, maxval=bound
            )
        else:
            b = jnp.zeros((fan_out,), jnp.float32)
        params.append((w, b))
    return params


def reference_forward(x, params, use_bias):
    """Pure-JAX reference using the identical cast sequence as the kernels."""
    if x.ndim > 2:
        x = x.reshape(x.shape[0], -1)
    elif x.ndim == 1:
        x = x[None, :]
    h = x.astype(jnp.float32)
    n_layers = len(params)
    for i, (w, b) in enumerate(params):
        h = jnp.dot(h.astype(w.dtype), w, preferred_element_type=jnp.float32)
        if use_bias:
            h = h + b.reshape(1, -1)
        if i < n_layers - 1:
            h = jnp.maximum(h, 0.0)
    return h.reshape(-1, 3, 2048)


if __name__ == "__main__":
    Z_SIZE = 32
    BATCH = 2
    USE_BIAS = True
    # TODO(synk): if batch grows to >=128, add an M-tile to the stage-2 grid so
    # the MXU sees 128-row aligned activation blocks (irrelevant at B=2).

    key = jax.random.PRNGKey(0)
    key, kx = jax.random.split(key)
    # latent comes in as (B, z, 1, 1) and is squeezed, like the PyTorch module
    x = jax.random.normal(kx, (BATCH, Z_SIZE, 1, 1), jnp.float32)

    params = make_params(key, Z_SIZE, USE_BIAS)

    out = jax.block_until_ready(generator_forward(x, params, USE_BIAS))
    ref = jax.block_until_ready(reference_forward(x, params, USE_BIAS))

    assert out.shape == (BATCH, 3, 2048), out.shape
    assert jnp.allclose(out, ref, atol=5e-3, rtol=5e-3), "mismatch vs reference"

    print("KERNEL_OK")
</pallas_src>

<mosaic_0001>
module attributes {stable_mosaic.version = 11 : i64} {
  func.func @_early_mlp_kernel(%arg0: memref<2x32xf32, #tpu.memory_space<vmem>>, %arg1: memref<32x64xbf16, #tpu.memory_space<vmem>>, %arg2: memref<1x64xf32, #tpu.memory_space<vmem>>, %arg3: memref<64x128xbf16, #tpu.memory_space<vmem>>, %arg4: memref<1x128xf32, #tpu.memory_space<vmem>>, %arg5: memref<128x512xbf16, #tpu.memory_space<vmem>>, %arg6: memref<1x512xf32, #tpu.memory_space<vmem>>, %arg7: memref<512x1024xbf16, #tpu.memory_space<vmem>>, %arg8: memref<1x1024xf32, #tpu.memory_space<vmem>>, %arg9: memref<2x1024xf32, #tpu.memory_space<vmem>>) attributes {dimension_semantics = [], scalar_prefetch = 0 : i64, scratch_operands = 0 : i64, tpu.core_type = #tpu.core_type<tc>} {
    %c0 = arith.constant 0 : index
    %c0_0 = arith.constant 0 : index
    %0 = vector.load %arg0[%c0, %c0_0] : memref<2x32xf32, #tpu.memory_space<vmem>>, vector<2x32xf32>
    %1 = arith.truncf %0 : vector<2x32xf32> to vector<2x32xbf16>
    %c0_1 = arith.constant 0 : index
    %c0_2 = arith.constant 0 : index
    %2 = vector.load %arg1[%c0_1, %c0_2] : memref<32x64xbf16, #tpu.memory_space<vmem>>, vector<32x64xbf16>
    %cst = arith.constant dense<0.000000e+00> : vector<2x64xf32>
    %3 = tpu.matmul %1, %2, %cst {dimension_numbers = #tpu.dot_dimension_numbers<[1], [0], [0], [1], [0, 0, 1, 1], [], []>} : vector<2x32xbf16>, vector<32x64xbf16>, vector<2x64xf32> -> vector<2x64xf32>
    %c0_3 = arith.constant 0 : index
    %c0_4 = arith.constant 0 : index
    %4 = vector.load %arg2[%c0_3, %c0_4] : memref<1x64xf32, #tpu.memory_space<vmem>>, vector<1x64xf32>
    %5 = vector.broadcast %4 : vector<1x64xf32> to vector<2x64xf32>
    %6 = arith.addf %3, %5 : vector<2x64xf32>
    %cst_5 = arith.constant 0.000000e+00 : f32
    %7 = vector.broadcast %cst_5 : f32 to vector<2x64xf32>
    %8 = arith.maximumf %6, %7 : vector<2x64xf32>
    %9 = arith.truncf %8 : vector<2x64xf32> to vector<2x64xbf16>
    %c0_6 = arith.constant 0 : index
    %c0_7 = arith.constant 0 : index
    %10 = vector.load %arg3[%c0_6, %c0_7] : memref<64x128xbf16, #tpu.memory_space<vmem>>, vector<64x128xbf16>
    %cst_8 = arith.constant dense<0.000000e+00> : vector<2x128xf32>
    %11 = tpu.matmul %9, %10, %cst_8 {dimension_numbers = #tpu.dot_dimension_numbers<[1], [0], [0], [1], [0, 0, 1, 1], [], []>} : vector<2x64xbf16>, vector<64x128xbf16>, vector<2x128xf32> -> vector<2x128xf32>
    %c0_9 = arith.constant 0 : index
    %c0_10 = arith.constant 0 : index
    %12 = vector.load %arg4[%c0_9, %c0_10] : memref<1x128xf32, #tpu.memory_space<vmem>>, vector<1x128xf32>
    %13 = vector.broadcast %12 : vector<1x128xf32> to vector<2x128xf32>
    %14 = arith.addf %11, %13 : vector<2x128xf32>
    %cst_11 = arith.constant 0.000000e+00 : f32
    %15 = vector.broadcast %cst_11 : f32 to vector<2x128xf32>
    %16 = arith.maximumf %14, %15 : vector<2x128xf32>
    %17 = arith.truncf %16 : vector<2x128xf32> to vector<2x128xbf16>
    %c0_12 = arith.constant 0 : index
    %c0_13 = arith.constant 0 : index
    %18 = vector.load %arg5[%c0_12, %c0_13] : memref<128x512xbf16, #tpu.memory_space<vmem>>, vector<128x512xbf16>
    %cst_14 = arith.constant dense<0.000000e+00> : vector<2x512xf32>
    %19 = tpu.matmul %17, %18, %cst_14 {dimension_numbers = #tpu.dot_dimension_numbers<[1], [0], [0], [1], [0, 0, 1, 1], [], []>} : vector<2x128xbf16>, vector<128x512xbf16>, vector<2x512xf32> -> vector<2x512xf32>
    %c0_15 = arith.constant 0 : index
    %c0_16 = arith.constant 0 : index
    %20 = vector.load %arg6[%c0_15, %c0_16] : memref<1x512xf32, #tpu.memory_space<vmem>>, vector<1x512xf32>
    %21 = vector.broadcast %20 : vector<1x512xf32> to vector<2x512xf32>
    %22 = arith.addf %19, %21 : vector<2x512xf32>
    %cst_17 = arith.constant 0.000000e+00 : f32
    %23 = vector.broadcast %cst_17 : f32 to vector<2x512xf32>
    %24 = arith.maximumf %22, %23 : vector<2x512xf32>
    %25 = arith.truncf %24 : vector<2x512xf32> to vector<2x512xbf16>
    %c0_18 = arith.constant 0 : index
    %c0_19 = arith.constant 0 : index
    %26 = vector.load %arg7[%c0_18, %c0_19] : memref<512x1024xbf16, #tpu.memory_space<vmem>>, vector<512x1024xbf16>
    %cst_20 = arith.constant dense<0.000000e+00> : vector<2x1024xf32>
    %27 = tpu.matmul %25, %26, %cst_20 {dimension_numbers = #tpu.dot_dimension_numbers<[1], [0], [0], [1], [0, 0, 1, 1], [], []>} : vector<2x512xbf16>, vector<512x1024xbf16>, vector<2x1024xf32> -> vector<2x1024xf32>
    %c0_21 = arith.constant 0 : index
    %c0_22 = arith.constant 0 : index
    %28 = vector.load %arg8[%c0_21, %c0_22] : memref<1x1024xf32, #tpu.memory_space<vmem>>, vector<1x1024xf32>
    %29 = vector.broadcast %28 : vector<1x1024xf32> to vector<2x1024xf32>
    %30 = arith.addf %27, %29 : vector<2x1024xf32>
    %cst_23 = arith.constant 0.000000e+00 : f32
    %31 = vector.broadcast %cst_23 : f32 to vector<2x1024xf32>
    %32 = arith.maximumf %30, %31 : vector<2x1024xf32>
    %c0_24 = arith.constant 0 : index
    %c0_25 = arith.constant 0 : index
    %33 = vector.load %arg9[%c0_24, %c0_25] : memref<2x1024xf32, #tpu.memory_space<vmem>>, vector<2x1024xf32>
    tpu.vector_store %arg9[%c0_24, %c0_25], %32 {strides = array<i32>} : memref<2x1024xf32, #tpu.memory_space<vmem>>, vector<2x1024xf32>,
    return
  }
}

</mosaic_0001>

<llo_original>
// kernel: tpu_custom_call.1
$region0: #{tpu_custom_call.1}
  #allocation0 [shape = 'u32[]', space=smem, size = 0x4, offset = 0x4, fixed_abs, tag = 'smem constant byte address 0x4 - core index']
  #allocation1 [shape = 'u32[144,128]{1,0:T(1,128)}', space=vmem, size = 0x12000, scoped, tag = 'internal scratch']
  %s0 = inlined_call_operand.hbm [shape: f32[2,32], index: 0, kind: input, shape index: {}]
  %s1 = inlined_call_operand.hbm [shape: bf16[32,64], index: 1, kind: input, shape index: {}]
  %s2 = inlined_call_operand.vmem [shape: f32[1,64], index: 2, kind: input, shape index: {}]
  %s3 = inlined_call_operand.hbm [shape: bf16[64,128], index: 3, kind: input, shape index: {}]
  %s4 = inlined_call_operand.vmem [shape: f32[1,128], index: 4, kind: input, shape index: {}]
  %s5 = inlined_call_operand.hbm [shape: bf16[128,512], index: 5, kind: input, shape index: {}]
  %s6 = inlined_call_operand.vmem [shape: f32[1,512], index: 6, kind: input, shape index: {}]
  %s7 = inlined_call_operand.hbm [shape: bf16[512,1024], index: 7, kind: input, shape index: {}]
  %s8 = inlined_call_operand.vmem [shape: f32[1,1024], index: 8, kind: input, shape index: {}]
  %s9 = inlined_call_operand.hbm [shape: f32[2,1024], index: 9, kind: output, shape index: {}]
  %s10 = sld [smem:[#allocation0]]
  $region66: #{tpu_custom_call.1} parent=0
    _
  %s12 = ssub.s32 1, %s10
  %s13 = scalar_select 0, %s12, %s10
  $region1: #{tpu_custom_call.1} parent=0
    #allocation2 [shape = 'u8[1024]{0}', space=vmem, size = 0x400, scoped, tag = 'input window, operand 0, single buffered']
    #allocation3 [shape = 's32[1]{0}', space=sflag, size = 0x4, scoped, tag = 'scoped memory for tpu_custom_call.1']
    #allocation4 [shape = 's32[1]{0}', space=sflag, size = 0x4, scoped, tag = 'scoped memory for tpu_custom_call.1']
    #allocation5 [shape = 'u8[8192]{0}', space=vmem, size = 0x2000, scoped, tag = 'input window, operand 1, single buffered']
    #allocation6 [shape = 's32[1]{0}', space=sflag, size = 0x4, scoped, tag = 'scoped memory for tpu_custom_call.1']
    #allocation7 [shape = 'u8[16384]{0}', space=vmem, size = 0x4000, scoped, tag = 'input window, operand 3, single buffered']
    #allocation8 [shape = 'u8[131072]{0}', space=vmem, size = 0x20000, scoped, tag = 'input window, operand 5, single buffered']
    #allocation9 [shape = 's32[1]{0}', space=sflag, size = 0x4, scoped, tag = 'scoped memory for tpu_custom_call.1']
    #allocation10 [shape = 'u8[1048576]{0}', space=vmem, size = 0x100000, scoped, tag = 'input window, operand 7, single buffered']
    #allocation11 [shape = 'u8[8192]{0}', space=vmem, size = 0x2000, scoped, tag = 'output window, operand 0, single buffered']
    %14 = vsyncpa [#allocation3], 0
    %15 = vsyncpa [#allocation6], 0
    %16 = vsyncpa [#allocation9], 0
    %17 = vsyncpa [#allocation4], 0
    // Predicated region
    $region2: #{tpu_custom_call.1} parent=1 // pred_check
      _
    $region3: #{tpu_custom_call.1} parent=1 // pred_check_branch
      %19 = sbr.rel (0) target = $region5
    $region4: #{tpu_custom_call.1} parent=1 // pred_region
      %s21 = ssub.s32 32, 32
      %22 = vsyncadd [#allocation3], %s21
      %s24 = sshll.u32 [#allocation2], 4
      %s25 = int_to_ptr.vmem [resolvable:$true] %s24
      %27 = dma.hbm_to_vmem [thread:$0]  %s0, 32, %s25, [#allocation3]
    $region5: #{tpu_custom_call.1} parent=1 // pred_fallthru
      _
    // Predicated region
    $region6: #{tpu_custom_call.1} parent=1 // pred_check
      _
    $region7: #{tpu_custom_call.1} parent=1 // pred_check_branch
      %29 = sbr.rel (0) target = $region9
    $region8: #{tpu_custom_call.1} parent=1 // pred_region
      %s31 = ssub.s32 256, 256
      %32 = vsyncadd [#allocation6], %s31
      %s33 = sshll.u32 [#allocation5], 4
      %s34 = int_to_ptr.vmem [resolvable:$true] %s33
      %39 = dma.hbm_to_vmem [thread:$0]  %s1, 256, %s34, [#allocation6], 64, 64, 4
    $region9: #{tpu_custom_call.1} parent=1 // pred_fallthru
      _
    // Predicated region
    $region10: #{tpu_custom_call.1} parent=1 // pred_check
      _
    $region11: #{tpu_custom_call.1} parent=1 // pred_check_branch
      %41 = sbr.rel (0) target = $region13
    $region12: #{tpu_custom_call.1} parent=1 // pred_region
      _
    $region13: #{tpu_custom_call.1} parent=1 // pred_fallthru
      _
    // Predicated region
    $region14: #{tpu_custom_call.1} parent=1 // pred_check
      _
    $region15: #{tpu_custom_call.1} parent=1 // pred_check_branch
      %43 = sbr.rel (0) target = $region17
    $region16: #{tpu_custom_call.1} parent=1 // pred_region
      %s45 = ssub.s32 512, 512
      %46 = vsyncadd [#allocation6], %s45
      %s47 = sshll.u32 [#allocation7], 4
      %s48 = int_to_ptr.vmem [resolvable:$true] %s47
      %53 = dma.hbm_to_vmem [thread:$0]  %s3, 512, %s48, [#allocation6], 64, 64, 4
    $region17: #{tpu_custom_call.1} parent=1 // pred_fallthru
      _
    // Predicated region
    $region18: #{tpu_custom_call.1} parent=1 // pred_check
      _
    $region19: #{tpu_custom_call.1} parent=1 // pred_check_branch
      %55 = sbr.rel (0) target = $region21
    $region20: #{tpu_custom_call.1} parent=1 // pred_region
      _
    $region21: #{tpu_custom_call.1} parent=1 // pred_fallthru
      _
    // Predicated region
    $region22: #{tpu_custom_call.1} parent=1 // pred_check
      _
    $region23: #{tpu_custom_call.1} parent=1 // pred_check_branch
      %57 = sbr.rel (0) target = $region25
    $region24: #{tpu_custom_call.1} parent=1 // pred_region
      %s59 = ssub.s32 4096, 4096
      %60 = vsyncadd [#allocation9], %s59
      %s61 = sshll.u32 [#allocation8], 4
      %s62 = int_to_ptr.vmem [resolvable:$true] %s61
      %67 = dma.hbm_to_vmem [thread:$0]  %s5, 4096, %s62, [#allocation9], 256, 256, 16
    $region25: #{tpu_custom_call.1} parent=1 // pred_fallthru
      _
    // Predicated region
    $region26: #{tpu_custom_call.1} parent=1 // pred_check
      _
    $region27: #{tpu_custom_call.1} parent=1 // pred_check_branch
      %69 = sbr.rel (0) target = $region29
    $region28: #{tpu_custom_call.1} parent=1 // pred_region
      _
    $region29: #{tpu_custom_call.1} parent=1 // pred_fallthru
      _
    // Predicated region
    $region30: #{tpu_custom_call.1} parent=1 // pred_check
      _
    $region31: #{tpu_custom_call.1} parent=1 // pred_check_branch
      %71 = sbr.rel (0) target = $region33
    $region32: #{tpu_custom_call.1} parent=1 // pred_region
      %s73 = ssub.s32 32768, 32768
      %74 = vsyncadd [#allocation9], %s73
      %s75 = sshll.u32 [#allocation10], 4
      %s76 = int_to_ptr.vmem [resolvable:$true] %s75
      %81 = dma.hbm_to_vmem [thread:$0]  %s7, 32768, %s76, [#allocation9], 512, 512, 32
    $region33: #{tpu_custom_call.1} parent=1 // pred_fallthru
      _
    // Predicated region
    $region34: #{tpu_custom_call.1} parent=1 // pred_check
      _
    $region35: #{tpu_custom_call.1} parent=1 // pred_check_branch
      %83 = sbr.rel (0) target = $region37
    $region36: #{tpu_custom_call.1} parent=1 // pred_region
      _
    $region37: #{tpu_custom_call.1} parent=1 // pred_fallthru
      _
    // Predicated region
    $region38: #{tpu_custom_call.1} parent=1 // pred_check
      _
    $region39: #{tpu_custom_call.1} parent=1 // pred_check_branch
      %85 = sbr.rel (0) target = $region41
    $region40: #{tpu_custom_call.1} parent=1 // pred_region
      %86 = dma.done [#allocation3], 32
    $region41: #{tpu_custom_call.1} parent=1 // pred_fallthru
      _
    // Predicated region
    $region42: #{tpu_custom_call.1} parent=1 // pred_check
      _
    $region43: #{tpu_custom_call.1} parent=1 // pred_check_branch
      %88 = sbr.rel (0) target = $region45
    $region44: #{tpu_custom_call.1} parent=1 // pred_region
      %89 = dma.done [#allocation6], 256
    $region45: #{tpu_custom_call.1} parent=1 // pred_fallthru
      _
    // Predicated region
    $region46: #{tpu_custom_call.1} parent=1 // pred_check
      _
    $region47: #{tpu_custom_call.1} parent=1 // pred_check_branch
      %91 = sbr.rel (0) target = $region49
    $region48: #{tpu_custom_call.1} parent=1 // pred_region
      %92 = dma.done [#allocation6], 512
    $region49: #{tpu_custom_call.1} parent=1 // pred_fallthru
      _
    // Predicated region
    $region50: #{tpu_custom_call.1} parent=1 // pred_check
      _
    $region51: #{tpu_custom_call.1} parent=1 // pred_check_branch
      %94 = sbr.rel (0) target = $region53
    $region52: #{tpu_custom_call.1} parent=1 // pred_region
      %95 = dma.done [#allocation9], 4096
    $region53: #{tpu_custom_call.1} parent=1 // pred_fallthru
      _
    // Predicated region
    $region54: #{tpu_custom_call.1} parent=1 // pred_check
      _
    $region55: #{tpu_custom_call.1} parent=1 // pred_check_branch
      %97 = sbr.rel (0) target = $region57
    $region56: #{tpu_custom_call.1} parent=1 // pred_region
      %98 = dma.done [#allocation9], 32768
    $region57: #{tpu_custom_call.1} parent=1 // pred_fallthru
      _
    %v100 = vld [vmem:[#allocation2] sm:$0x3]
    %v101 = vpack.c.bf16 %v100, %v100
    %v102 = vld [vmem:[#allocation5] sm:$0xf]
    %v103 = vld [vmem:[#allocation5 + $0x4] sm:$0xf]
    %v104 = vld [vmem:[#allocation5 + $0x8] sm:$0xf]
    %v105 = vld [vmem:[#allocation5 + $0xc] sm:$0xf]
    %v106 = vld [vmem:[%s2] sm:$0x1]
    %v108 = vlaneseq
    %v109 = vshrl.u32 %v108, 7
    %v110 = vsub.s32 0, %v109
    %v111 = vrot.slane %v106, %v110
    %v117 = vunpack.c.l.b16 %v102
    %v118 = vunpack.c.l.b16 %v103
    %v119 = vunpack.c.l.b16 %v104
    %v120 = vunpack.c.l.b16 %v105
    %v121 = vpack.c.b16 %v118, %v117
    %v122 = vpack.c.b16 %v120, %v119
    %vm125 = vcmask 261120
    %v127 = vsel %vm125, %v101, 0
    %129 = vmatprep.subr.bf16.mxu0 0
    %130 = vmatpush1.bf16.msra.mxu0 0
    %131 = vmatprep.subr.bf16.mxu0 0
    %132 = vmatpush1.bf16.msra.mxu0 0
    %133 = vmatprep.subr.bf16.mxu0 0
    %134 = vmatpush1.bf16.msra.mxu0 0
    %135 = vmatprep.subr.bf16.mxu0 0
    %136 = vmatpush1.bf16.msra.mxu0 0
    %137 = vmatprep.subr.bf16.mxu0 0
    %138 = vmatpush1.bf16.msra.mxu0 0
    %139 = vmatprep.subr.bf16.mxu0 0
    %140 = vmatpush1.bf16.msra.mxu0 0
    %141 = vmatprep.subr.bf16.mxu0 0
    %142 = vmatpush1.bf16.msra.mxu0 %v122
    %143 = vmatprep.subr.bf16.mxu0 0
    %144 = vmatpush1.bf16.msra.mxu0 %v121
    %145 = vmatprep.subr.bf16.mxu0 0
    %146 = vmatpush2.bf16.msra.mxu0 0
    %147 = vmatprep.subr.bf16.mxu0 0
    %148 = vmatpush2.bf16.msra.mxu0 0
    %149 = vmatprep.subr.bf16.mxu0 0
    %150 = vmatpush2.bf16.msra.mxu0 0
    %151 = vmatprep.subr.bf16.mxu0 0
    %152 = vmatpush2.bf16.msra.mxu0 0
    %153 = vmatprep.subr.bf16.mxu0 0
    %154 = vmatpush2.bf16.msra.mxu0 0
    %155 = vmatprep.subr.bf16.mxu0 0
    %156 = vmatpush2.bf16.msra.mxu0 0
    %157 = vmatprep.subr.bf16.mxu0 0
    %158 = vmatpush2.bf16.msra.mxu0 0
    %159 = vmatprep.subr.bf16.mxu0 0
    %160 = vmatpush2.bf16.msra.mxu0 0
    %161 = vmatprep.mubr.bf16.mxu0 0
    %162 = vmatmul.mubr.bf16.gmra.mxu0 %v127
    %v163 = vpop.f32.mrf.mxu0
    %v164 = vadd.f32 %v111, %v163
    %v165 = vpop.f32.mrf.mxu0
    %v166 = vpop.f32.mrf.mxu0
    %v167 = vpop.f32.mrf.mxu0
    %168 = vdwg.mxu0
    %v169 = vmax.f32 %v164, 0.0
    %v170 = vpack.c.bf16 %v169, %v169
    %v171 = vld [vmem:[#allocation7] sm:$0xf]
    %v172 = vld [vmem:[#allocation7 + $0x4] sm:$0xf]
    %v173 = vld [vmem:[#allocation7 + $0x8] sm:$0xf]
    %v174 = vld [vmem:[#allocation7 + $0xc] sm:$0xf]
    %v175 = vld [vmem:[#allocation7 + $0x10] sm:$0xf]
    %v176 = vld [vmem:[#allocation7 + $0x14] sm:$0xf]
    %v177 = vld [vmem:[#allocation7 + $0x18] sm:$0xf]
    %v178 = vld [vmem:[#allocation7 + $0x1c] sm:$0xf]
    %v179 = vld [vmem:[%s4] sm:$0x1]
    %v181 = vlaneseq
    %v182 = vshrl.u32 %v181, 7
    %v183 = vsub.s32 0, %v182
    %v184 = vrot.slane %v179, %v183
    %v194 = vunpack.c.l.b16 %v171
    %v195 = vunpack.c.l.b16 %v172
    %v196 = vunpack.c.l.b16 %v173
    %v197 = vunpack.c.l.b16 %v174
    %v198 = vunpack.c.l.b16 %v175
    %v199 = vunpack.c.l.b16 %v176
    %v200 = vunpack.c.l.b16 %v177
    %v201 = vunpack.c.l.b16 %v178
    %v202 = vpack.c.b16 %v195, %v194
    %v203 = vpack.c.b16 %v197, %v196
    %v204 = vpack.c.b16 %v199, %v198
    %v205 = vpack.c.b16 %v201, %v200
    %vm210 = vcmask 523264
    %v212 = vsel %vm210, %v170, 0
    %214 = vmatprep.subr.bf16.mxu0 0
    %215 = vmatpush1.bf16.msra.mxu0 0
    %216 = vmatprep.subr.bf16.mxu0 0
    %217 = vmatpush1.bf16.msra.mxu0 0
    %218 = vmatprep.subr.bf16.mxu0 0
    %219 = vmatpush1.bf16.msra.mxu0 0
    %220 = vmatprep.subr.bf16.mxu0 0
    %221 = vmatpush1.bf16.msra.mxu0 0
    %222 = vmatprep.subr.bf16.mxu0 0
    %223 = vmatpush1.bf16.msra.mxu0 %v205
    %224 = vmatprep.subr.bf16.mxu0 0
    %225 = vmatpush1.bf16.msra.mxu0 %v204
    %226 = vmatprep.subr.bf16.mxu0 0
    %227 = vmatpush1.bf16.msra.mxu0 %v203
    %228 = vmatprep.subr.bf16.mxu0 0
    %229 = vmatpush1.bf16.msra.mxu0 %v202
    %230 = vmatprep.subr.bf16.mxu0 0
    %231 = vmatpush2.bf16.msra.mxu0 0
    %232 = vmatprep.subr.bf16.mxu0 0
    %233 = vmatpush2.bf16.msra.mxu0 0
    %234 = vmatprep.subr.bf16.mxu0 0
    %235 = vmatpush2.bf16.msra.mxu0 0
    %236 = vmatprep.subr.bf16.mxu0 0
    %237 = vmatpush2.bf16.msra.mxu0 0
    %238 = vmatprep.subr.bf16.mxu0 0
    %239 = vmatpush2.bf16.msra.mxu0 0
    %240 = vmatprep.subr.bf16.mxu0 0
    %241 = vmatpush2.bf16.msra.mxu0 0
    %242 = vmatprep.subr.bf16.mxu0 0
    %243 = vmatpush2.bf16.msra.mxu0 0
    %244 = vmatprep.subr.bf16.mxu0 0
    %245 = vmatpush2.bf16.msra.mxu0 0
    %246 = vmatprep.mubr.bf16.mxu0 0
    %247 = vmatmul.mubr.bf16.gmra.mxu0 %v212
    %v248 = vpop.f32.mrf.mxu0
    %v249 = vadd.f32 %v184, %v248
    %v250 = vpop.f32.mrf.mxu0
    %v251 = vpop.f32.mrf.mxu0
    %v252 = vpop.f32.mrf.mxu0
    %253 = vdwg.mxu0
    %v254 = vmax.f32 %v249, 0.0
    %v255 = vpack.c.bf16 %v254, %v254
    %v256 = vld [vmem:[#allocation8] sm:$0xff]
    %v257 = vld [vmem:[#allocation8 + $0x8] sm:$0xff]
    %v258 = vld [vmem:[#allocation8 + $0x10] sm:$0xff]
    %v259 = vld [vmem:[#allocation8 + $0x18] sm:$0xff]
    %v260 = vld [vmem:[#allocation8 + $0x20] sm:$0xff]
    %v261 = vld [vmem:[#allocation8 + $0x28] sm:$0xff]
    %v262 = vld [vmem:[#allocation8 + $0x30] sm:$0xff]
    %v263 = vld [vmem:[#allocation8 + $0x38] sm:$0xff]
    %v264 = vld [vmem:[#allocation8 + $0x40] sm:$0xff]
    %v265 = vld [vmem:[#allocation8 + $0x48] sm:$0xff]
    %v266 = vld [vmem:[#allocation8 + $0x50] sm:$0xff]
    %v267 = vld [vmem:[#allocation8 + $0x58] sm:$0xff]
    %v268 = vld [vmem:[#allocation8 + $0x60] sm:$0xff]
    %v269 = vld [vmem:[#allocation8 + $0x68] sm:$0xff]
    %v270 = vld [vmem:[#allocation8 + $0x70] sm:$0xff]
    %v271 = vld [vmem:[#allocation8 + $0x78] sm:$0xff]
    %v272 = vld [vmem:[#allocation8 + $0x80] sm:$0xff]
    %v273 = vld [vmem:[#allocation8 + $0x88] sm:$0xff]
    %v274 = vld [vmem:[#allocation8 + $0x90] sm:$0xff]
    %v275 = vld [vmem:[#allocation8 + $0x98] sm:$0xff]
    %v276 = vld [vmem:[#allocation8 + $0xa0] sm:$0xff]
    %v277 = vld [vmem:[#allocation8 + $0xa8] sm:$0xff]
    %v278 = vld [vmem:[#allocation8 + $0xb0] sm:$0xff]
    %v279 = vld [vmem:[#allocation8 + $0xb8] sm:$0xff]
    %v280 = vld [vmem:[#allocation8 + $0xc0] sm:$0xff]
    %v281 = vld [vmem:[#allocation8 + $0xc8] sm:$0xff]
    %v282 = vld [vmem:[#allocation8 + $0xd0] sm:$0xff]
    %v283 = vld [vmem:[#allocation8 + $0xd8] sm:$0xff]
    %v284 = vld [vmem:[#allocation8 + $0xe0] sm:$0xff]
    %v285 = vld [vmem:[#allocation8 + $0xe8] sm:$0xff]
    %v286 = vld [vmem:[#allocation8 + $0xf0] sm:$0xff]
    %v287 = vld [vmem:[#allocation8 + $0xf8] sm:$0xff]
    %v288 = vld [vmem:[%s6] sm:$0xf]
    %v290 = vlaneseq
    %v291 = vshrl.u32 %v290, 7
    %v292 = vsub.s32 0, %v291
    %v293 = vrot.slane %v288, %v292
    %v294 = vlaneseq
    %v295 = vshrl.u32 %v294, 7
    %v296 = vsub.s32 1, %v295
    %v297 = vrot.slane %v288, %v296
    %v298 = vlaneseq
    %v299 = vshrl.u32 %v298, 7
    %v300 = vsub.s32 2, %v299
    %v301 = vrot.slane %v288, %v300
    %v302 = vlaneseq
    %v303 = vshrl.u32 %v302, 7
    %v304 = vsub.s32 3, %v303
    %v305 = vrot.slane %v288, %v304
    %v342 = vunpack.c.l.b16 %v256
    %v343 = vunpack.c.h.b16 %v256
    %v344 = vunpack.c.l.b16 %v257
    %v345 = vunpack.c.h.b16 %v257
    %v346 = vunpack.c.l.b16 %v258
    %v347 = vunpack.c.h.b16 %v258
    %v348 = vunpack.c.l.b16 %v259
    %v349 = vunpack.c.h.b16 %v259
    %v350 = vunpack.c.l.b16 %v260
    %v351 = vunpack.c.h.b16 %v260
    %v352 = vunpack.c.l.b16 %v261
    %v353 = vunpack.c.h.b16 %v261
    %v354 = vunpack.c.l.b16 %v262
    %v355 = vunpack.c.h.b16 %v262
    %v356 = vunpack.c.l.b16 %v263
    %v357 = vunpack.c.h.b16 %v263
    %v358 = vunpack.c.l.b16 %v264
    %v359 = vunpack.c.h.b16 %v264
    %v360 = vunpack.c.l.b16 %v265
    %v361 = vunpack.c.h.b16 %v265
    %v362 = vunpack.c.l.b16 %v266
    %v363 = vunpack.c.h.b16 %v266
    %v364 = vunpack.c.l.b16 %v267
    %v365 = vunpack.c.h.b16 %v267
    %v366 = vunpack.c.l.b16 %v268
    %v367 = vunpack.c.h.b16 %v268
    %v368 = vunpack.c.l.b16 %v269
    %v369 = vunpack.c.h.b16 %v269
    %v370 = vunpack.c.l.b16 %v270
    %v371 = vunpack.c.h.b16 %v270
    %v372 = vunpack.c.l.b16 %v271
    %v373 = vunpack.c.h.b16 %v271
    %v374 = vunpack.c.l.b16 %v272
    %v375 = vunpack.c.h.b16 %v272
    %v376 = vunpack.c.l.b16 %v273
    %v377 = vunpack.c.h.b16 %v273
    %v378 = vunpack.c.l.b16 %v274
    %v379 = vunpack.c.h.b16 %v274
    %v380 = vunpack.c.l.b16 %v275
    %v381 = vunpack.c.h.b16 %v275
    %v382 = vunpack.c.l.b16 %v276
    %v383 = vunpack.c.h.b16 %v276
    %v384 = vunpack.c.l.b16 %v277
    %v385 = vunpack.c.h.b16 %v277
    %v386 = vunpack.c.l.b16 %v278
    %v387 = vunpack.c.h.b16 %v278
    %v388 = vunpack.c.l.b16 %v279
    %v389 = vunpack.c.h.b16 %v279
    %v390 = vunpack.c.l.b16 %v280
    %v391 = vunpack.c.h.b16 %v280
    %v392 = vunpack.c.l.b16 %v281
    %v393 = vunpack.c.h.b16 %v281
    %v394 = vunpack.c.l.b16 %v282
    %v395 = vunpack.c.h.b16 %v282
    %v396 = vunpack.c.l.b16 %v283
    %v397 = vunpack.c.h.b16 %v283
    %v398 = vunpack.c.l.b16 %v284
    %v399 = vunpack.c.h.b16 %v284
    %v400 = vunpack.c.l.b16 %v285
    %v401 = vunpack.c.h.b16 %v285
    %v402 = vunpack.c.l.b16 %v286
    %v403 = vunpack.c.h.b16 %v286
    %v404 = vunpack.c.l.b16 %v287
    %v405 = vunpack.c.h.b16 %v287
    %v406 = vpack.c.b16 %v346, %v342
    %v407 = vpack.c.b16 %v347, %v343
    %v408 = vpack.c.b16 %v348, %v344
    %v409 = vpack.c.b16 %v349, %v345
    %v410 = vpack.c.b16 %v354, %v350
    %v411 = vpack.c.b16 %v355, %v351
    %v412 = vpack.c.b16 %v356, %v352
    %v413 = vpack.c.b16 %v357, %v353
    %v414 = vpack.c.b16 %v362, %v358
    %v415 = vpack.c.b16 %v363, %v359
    %v416 = vpack.c.b16 %v364, %v360
    %v417 = vpack.c.b16 %v365, %v361
    %v418 = vpack.c.b16 %v370, %v366
    %v419 = vpack.c.b16 %v371, %v367
    %v420 = vpack.c.b16 %v372, %v368
    %v421 = vpack.c.b16 %v373, %v369
    %v422 = vpack.c.b16 %v378, %v374
    %v423 = vpack.c.b16 %v379, %v375
    %v424 = vpack.c.b16 %v380, %v376
    %v425 = vpack.c.b16 %v381, %v377
    %v426 = vpack.c.b16 %v386, %v382
    %v427 = vpack.c.b16 %v387, %v383
    %v428 = vpack.c.b16 %v388, %v384
    %v429 = vpack.c.b16 %v389, %v385
    %v430 = vpack.c.b16 %v394, %v390
    %v431 = vpack.c.b16 %v395, %v391
    %v432 = vpack.c.b16 %v396, %v392
    %v433 = vpack.c.b16 %v397, %v393
    %v434 = vpack.c.b16 %v402, %v398
    %v435 = vpack.c.b16 %v403, %v399
    %v436 = vpack.c.b16 %v404, %v400
    %v437 = vpack.c.b16 %v405, %v401
    %470 = vmatprep.subr.bf16.mxu0 %v435
    %471 = vmatpush1.bf16.msra.mxu0 %v434
    %472 = vmatprep.subr.bf16.mxu0 %v431
    %473 = vmatpush1.bf16.msra.mxu0 %v430
    %474 = vmatprep.subr.bf16.mxu0 %v427
    %475 = vmatpush1.bf16.msra.mxu0 %v426
    %476 = vmatprep.subr.bf16.mxu0 %v423
    %477 = vmatpush1.bf16.msra.mxu0 %v422
    %478 = vmatprep.subr.bf16.mxu0 %v419
    %479 = vmatpush1.bf16.msra.mxu0 %v418
    %480 = vmatprep.subr.bf16.mxu0 %v415
    %481 = vmatpush1.bf16.msra.mxu0 %v414
    %482 = vmatprep.subr.bf16.mxu0 %v411
    %483 = vmatpush1.bf16.msra.mxu0 %v410
    %484 = vmatprep.subr.bf16.mxu0 %v407
    %485 = vmatpush1.bf16.msra.mxu0 %v406
    %486 = vmatprep.subr.bf16.mxu0 0
    %487 = vmatpush2.bf16.msra.mxu0 0
    %488 = vmatprep.subr.bf16.mxu0 0
    %489 = vmatpush2.bf16.msra.mxu0 0
    %490 = vmatprep.subr.bf16.mxu0 0
    %491 = vmatpush2.bf16.msra.mxu0 0
    %492 = vmatprep.subr.bf16.mxu0 0
    %493 = vmatpush2.bf16.msra.mxu0 0
    %494 = vmatprep.subr.bf16.mxu0 0
    %495 = vmatpush2.bf16.msra.mxu0 0
    %496 = vmatprep.subr.bf16.mxu0 0
    %497 = vmatpush2.bf16.msra.mxu0 0
    %498 = vmatprep.subr.bf16.mxu0 0
    %499 = vmatpush2.bf16.msra.mxu0 0
    %500 = vmatprep.subr.bf16.mxu0 0
    %501 = vmatpush2.bf16.msra.mxu0 0
    %502 = vmatprep.mubr.bf16.mxu0 0
    %503 = vmatmul.mubr.bf16.gmra.mxu0 %v255
    %v504 = vpop.f32.mrf.mxu0
    %v505 = vadd.f32 %v293, %v504
    %v506 = vpop.f32.mrf.mxu0
    %v507 = vadd.f32 %v297, %v506
    %v508 = vpop.f32.mrf.mxu0
    %v509 = vpop.f32.mrf.mxu0
    %510 = vdwg.mxu0
    %511 = vmatprep.subr.bf16.mxu0 %v437
    %512 = vmatpush1.bf16.msra.mxu0 %v436
    %513 = vmatprep.subr.bf16.mxu0 %v433
    %514 = vmatpush1.bf16.msra.mxu0 %v432
    %515 = vmatprep.subr.bf16.mxu0 %v429
    %516 = vmatpush1.bf16.msra.mxu0 %v428
    %517 = vmatprep.subr.bf16.mxu0 %v425
    %518 = vmatpush1.bf16.msra.mxu0 %v424
    %519 = vmatprep.subr.bf16.mxu0 %v421
    %520 = vmatpush1.bf16.msra.mxu0 %v420
    %521 = vmatprep.subr.bf16.mxu0 %v417
    %522 = vmatpush1.bf16.msra.mxu0 %v416
    %523 = vmatprep.subr.bf16.mxu0 %v413
    %524 = vmatpush1.bf16.msra.mxu0 %v412
    %525 = vmatprep.subr.bf16.mxu0 %v409
    %526 = vmatpush1.bf16.msra.mxu0 %v408
    %527 = vmatprep.subr.bf16.mxu0 0
    %528 = vmatpush2.bf16.msra.mxu0 0
    %529 = vmatprep.subr.bf16.mxu0 0
    %530 = vmatpush2.bf16.msra.mxu0 0
    %531 = vmatprep.subr.bf16.mxu0 0
    %532 = vmatpush2.bf16.msra.mxu0 0
    %533 = vmatprep.subr.bf16.mxu0 0
    %534 = vmatpush2.bf16.msra.mxu0 0
    %535 = vmatprep.subr.bf16.mxu0 0
    %536 = vmatpush2.bf16.msra.mxu0 0
    %537 = vmatprep.subr.bf16.mxu0 0
    %538 = vmatpush2.bf16.msra.mxu0 0
    %539 = vmatprep.subr.bf16.mxu0 0
    %540 = vmatpush2.bf16.msra.mxu0 0
    %541 = vmatprep.subr.bf16.mxu0 0
    %542 = vmatpush2.bf16.msra.mxu0 0
    %543 = vmatprep.mubr.bf16.mxu0 0
    %544 = vmatmul.mubr.bf16.gmra.mxu0 %v255
    %v545 = vpop.f32.mrf.mxu0
    %v546 = vadd.f32 %v301, %v545
    %v547 = vpop.f32.mrf.mxu0
    %v548 = vadd.f32 %v305, %v547
    %v549 = vpop.f32.mrf.mxu0
    %v550 = vpop.f32.mrf.mxu0
    %551 = vdwg.mxu0
    %v552 = vmax.f32 %v505, 0.0
    %v553 = vmax.f32 %v507, 0.0
    %v554 = vmax.f32 %v546, 0.0
    %v555 = vmax.f32 %v548, 0.0
    %v556 = vpack.c.bf16 %v552, %v552
    %v557 = vpack.c.bf16 %v553, %v553
    %v558 = vpack.c.bf16 %v554, %v554
    %v559 = vpack.c.bf16 %v555, %v555
    %v560 = vld [vmem:[#allocation10] sm:$0xff]
    %v561 = vld [vmem:[#allocation10 + $0x8] sm:$0xff]
    %v562 = vld [vmem:[#allocation10 + $0x10] sm:$0xff]
    %v563 = vld [vmem:[#allocation10 + $0x18] sm:$0xff]
    %v564 = vld [vmem:[#allocation10 + $0x20] sm:$0xff]
    %v565 = vld [vmem:[#allocation10 + $0x28] sm:$0xff]
    %v566 = vld [vmem:[#allocation10 + $0x30] sm:$0xff]
    %v567 = vld [vmem:[#allocation10 + $0x38] sm:$0xff]
    %v568 = vld [vmem:[#allocation10 + $0x40] sm:$0xff]
    %v569 = vld [vmem:[#allocation10 + $0x48] sm:$0xff]
    %v570 = vld [vmem:[#allocation10 + $0x50] sm:$0xff]
    %v571 = vld [vmem:[#allocation10 + $0x58] sm:$0xff]
    %v572 = vld [vmem:[#allocation10 + $0x60] sm:$0xff]
    %v573 = vld [vmem:[#allocation10 + $0x68] sm:$0xff]
    %v574 = vld [vmem:[#allocation10 + $0x70] sm:$0xff]
    %v575 = vld [vmem:[#allocation10 + $0x78] sm:$0xff]
    %v576 = vld [vmem:[#allocation10 + $0x80] sm:$0xff]
    %v577 = vld [vmem:[#allocation10 + $0x88] sm:$0xff]
    %v578 = vld [vmem:[#allocation10 + $0x90] sm:$0xff]
    %v579 = vld [vmem:[#allocation10 + $0x98] sm:$0xff]
    %v580 = vld [vmem:[#allocation10 + $0xa0] sm:$0xff]
    %v581 = vld [vmem:[#allocation10 + $0xa8] sm:$0xff]
    %v582 = vld [vmem:[#allocation10 + $0xb0] sm:$0xff]
    %v583 = vld [vmem:[#allocation10 + $0xb8] sm:$0xff]
    %v584 = vld [vmem:[#allocation10 + $0xc0] sm:$0xff]
    %v585 = vld [vmem:[#allocation10 + $0xc8] sm:$0xff]
    %v586 = vld [vmem:[#allocation10 + $0xd0] sm:$0xff]
    %v587 = vld [vmem:[#allocation10 + $0xd8] sm:$0xff]
    %v588 = vld [vmem:[#allocation10 + $0xe0] sm:$0xff]
    %v589 = vld [vmem:[#allocation10 + $0xe8] sm:$0xff]
    %v590 = vld [vmem:[#allocation10 + $0xf0] sm:$0xff]
    %v591 = vld [vmem:[#allocation10 + $0xf8] sm:$0xff]
    %v592 = vld [vmem:[#allocation10 + $0x100] sm:$0xff]
    %v593 = vld [vmem:[#allocation10 + $0x108] sm:$0xff]
    %v594 = vld [vmem:[#allocation10 + $0x110] sm:$0xff]
    %v595 = vld [vmem:[#allocation10 + $0x118] sm:$0xff]
    %v596 = vld [vmem:[#allocation10 + $0x120] sm:$0xff]
    %v597 = vld [vmem:[#allocation10 + $0x128] sm:$0xff]
    %v598 = vld [vmem:[#allocation10 + $0x130] sm:$0xff]
    %v599 = vld [vmem:[#allocation10 + $0x138] sm:$0xff]
    %v600 = vld [vmem:[#allocation10 + $0x140] sm:$0xff]
    %v601 = vld [vmem:[#allocation10 + $0x148] sm:$0xff]
    %v602 = vld [vmem:[#allocation10 + $0x150] sm:$0xff]
    %v603 = vld [vmem:[#allocation10 + $0x158] sm:$0xff]
    %v604 = vld [vmem:[#allocation10 + $0x160] sm:$0xff]
    %v605 = vld [vmem:[#allocation10 + $0x168] sm:$0xff]
    %v606 = vld [vmem:[#allocation10 + $0x170] sm:$0xff]
    %v607 = vld [vmem:[#allocation10 + $0x178] sm:$0xff]
    %v608 = vld [vmem:[#allocation10 + $0x180] sm:$0xff]
    %v609 = vld [vmem:[#allocation10 + $0x188] sm:$0xff]
    %v610 = vld [vmem:[#allocation10 + $0x190] sm:$0xff]
    %v611 = vld [vmem:[#allocation10 + $0x198] sm:$0xff]
    %v612 = vld [vmem:[#allocation10 + $0x1a0] sm:$0xff]
    %v613 = vld [vmem:[#allocation10 + $0x1a8] sm:$0xff]
    %v614 = vld [vmem:[#allocation10 + $0x1b0] sm:$0xff]
    %v615 = vld [vmem:[#allocation10 + $0x1b8] sm:$0xff]
    %v616 = vld [vmem:[#allocation10 + $0x1c0] sm:$0xff]
    %v617 = vld [vmem:[#allocation10 + $0x1c8] sm:$0xff]
    %v618 = vld [vmem:[#allocation10 + $0x1d0] sm:$0xff]
    %v619 = vld [vmem:[#allocation10 + $0x1d8] sm:$0xff]
    %v620 = vld [vmem:[#allocation10 + $0x1e0] sm:$0xff]
    %v621 = vld [vmem:[#allocation10 + $0x1e8] sm:$0xff]
    %v622 = vld [vmem:[#allocation10 + $0x1f0] sm:$0xff]
    %v623 = vld [vmem:[#allocation10 + $0x1f8] sm:$0xff]
    %v624 = vld [vmem:[#allocation10 + $0x200] sm:$0xff]
    %v625 = vld [vmem:[#allocation10 + $0x208] sm:$0xff]
    %v626 = vld [vmem:[#allocation10 + $0x210] sm:$0xff]
    %v627 = vld [vmem:[#allocation10 + $0x218] sm:$0xff]
    %v628 = vld [vmem:[#allocation10 + $0x220] sm:$0xff]
    %v629 = vld [vmem:[#allocation10 + $0x228] sm:$0xff]
    %v630 = vld [vmem:[#allocation10 + $0x230] sm:$0xff]
    %v631 = vld [vmem:[#allocation10 + $0x238] sm:$0xff]
    %v632 = vld [vmem:[#allocation10 + $0x240] sm:$0xff]
    %v633 = vld [vmem:[#allocation10 + $0x248] sm:$0xff]
    %v634 = vld [vmem:[#allocation10 + $0x250] sm:$0xff]
    %v635 = vld [vmem:[#allocation10 + $0x258] sm:$0xff]
    %v636 = vld [vmem:[#allocation10 + $0x260] sm:$0xff]
    %v637 = vld [vmem:[#allocation10 + $0x268] sm:$0xff]
    %v638 = vld [vmem:[#allocation10 + $0x270] sm:$0xff]
    %v639 = vld [vmem:[#allocation10 + $0x278] sm:$0xff]
    %v640 = vld [vmem:[#allocation10 + $0x280] sm:$0xff]
    %v641 = vld [vmem:[#allocation10 + $0x288] sm:$0xff]
    %v642 = vld [vmem:[#allocation10 + $0x290] sm:$0xff]
    %v643 = vld [vmem:[#allocation10 + $0x298] sm:$0xff]
    %v644 = vld [vmem:[#allocation10 + $0x2a0] sm:$0xff]
    %v645 = vld [vmem:[#allocation10 + $0x2a8] sm:$0xff]
    %v646 = vld [vmem:[#allocation10 + $0x2b0] sm:$0xff]
    %v647 = vld [vmem:[#allocation10 + $0x2b8] sm:$0xff]
    %v648 = vld [vmem:[#allocation10 + $0x2c0] sm:$0xff]
    %v649 = vld [vmem:[#allocation10 + $0x2c8] sm:$0xff]
    %v650 = vld [vmem:[#allocation10 + $0x2d0] sm:$0xff]
    %v651 = vld [vmem:[#allocation10 + $0x2d8] sm:$0xff]
    %v652 = vld [vmem:[#allocation10 + $0x2e0] sm:$0xff]
    %v653 = vld [vmem:[#allocation10 + $0x2e8] sm:$0xff]
    %v654 = vld [vmem:[#allocation10 + $0x2f0] sm:$0xff]
    %v655 = vld [vmem:[#allocation10 + $0x2f8] sm:$0xff]
    %v656 = vld [vmem:[#allocation10 + $0x300] sm:$0xff]
    %v657 = vld [vmem:[#allocation10 + $0x308] sm:$0xff]
    %v658 = vld [vmem:[#allocation10 + $0x310] sm:$0xff]
    %v659 = vld [vmem:[#allocation10 + $0x318] sm:$0xff]
    %v660 = vld [vmem:[#allocation10 + $0x320] sm:$0xff]
    %v661 = vld [vmem:[#allocation10 + $0x328] sm:$0xff]
    %v662 = vld [vmem:[#allocation10 + $0x330] sm:$0xff]
    %v663 = vld [vmem:[#allocation10 + $0x338] sm:$0xff]
    %v664 = vld [vmem:[#allocation10 + $0x340] sm:$0xff]
    %v665 = vld [vmem:[#allocation10 + $0x348] sm:$0xff]
    %v666 = vld [vmem:[#allocation10 + $0x350] sm:$0xff]
    %v667 = vld [vmem:[#allocation10 + $0x358] sm:$0xff]
    %v668 = vld [vmem:[#allocation10 + $0x360] sm:$0xff]
    %v669 = vld [vmem:[#allocation10 + $0x368] sm:$0xff]
    %v670 = vld [vmem:[#allocation10 + $0x370] sm:$0xff]
    %v671 = vld [vmem:[#allocation10 + $0x378] sm:$0xff]
    %v672 = vld [vmem:[#allocation10 + $0x380] sm:$0xff]
    %v673 = vld [vmem:[#allocation10 + $0x388] sm:$0xff]
    %v674 = vld [vmem:[#allocation10 + $0x390] sm:$0xff]
    %v675 = vld [vmem:[#allocation10 + $0x398] sm:$0xff]
    %v676 = vld [vmem:[#allocation10 + $0x3a0] sm:$0xff]
    %v677 = vld [vmem:[#allocation10 + $0x3a8] sm:$0xff]
    %v678 = vld [vmem:[#allocation10 + $0x3b0] sm:$0xff]
    %v679 = vld [vmem:[#allocation10 + $0x3b8] sm:$0xff]
    %v680 = vld [vmem:[#allocation10 + $0x3c0] sm:$0xff]
    %v681 = vld [vmem:[#allocation10 + $0x3c8] sm:$0xff]
    %v682 = vld [vmem:[#allocation10 + $0x3d0] sm:$0xff]
    %v683 = vld [vmem:[#allocation10 + $0x3d8] sm:$0xff]
    %v684 = vld [vmem:[#allocation10 + $0x3e0] sm:$0xff]
    %v685 = vld [vmem:[#allocation10 + $0x3e8] sm:$0xff]
    %v686 = vld [vmem:[#allocation10 + $0x3f0] sm:$0xff]
    %v687 = vld [vmem:[#allocation10 + $0x3f8] sm:$0xff]
    %v688 = vld [vmem:[#allocation10 + $0x400] sm:$0xff]
    %v689 = vld [vmem:[#allocation10 + $0x408] sm:$0xff]
    %v690 = vld [vmem:[#allocation10 + $0x410] sm:$0xff]
    %v691 = vld [vmem:[#allocation10 + $0x418] sm:$0xff]
    %v692 = vld [vmem:[#allocation10 + $0x420] sm:$0xff]
    %v693 = vld [vmem:[#allocation10 + $0x428] sm:$0xff]
    %v694 = vld [vmem:[#allocation10 + $0x430] sm:$0xff]
    %v695 = vld [vmem:[#allocation10 + $0x438] sm:$0xff]
    %v696 = vld [vmem:[#allocation10 + $0x440] sm:$0xff]
    %v697 = vld [vmem:[#allocation10 + $0x448] sm:$0xff]
    %v698 = vld [vmem:[#allocation10 + $0x450] sm:$0xff]
    %v699 = vld [vmem:[#allocation10 + $0x458] sm:$0xff]
    %v700 = vld [vmem:[#allocation10 + $0x460] sm:$0xff]
    %v701 = vld [vmem:[#allocation10 + $0x468] sm:$0xff]
    %v702 = vld [vmem:[#allocation10 + $0x470] sm:$0xff]
    %v703 = vld [vmem:[#allocation10 + $0x478] sm:$0xff]
    %v704 = vld [vmem:[#allocation10 + $0x480] sm:$0xff]
    %v705 = vld [vmem:[#allocation10 + $0x488] sm:$0xff]
    %v706 = vld [vmem:[#allocation10 + $0x490] sm:$0xff]
    %v707 = vld [vmem:[#allocation10 + $0x498] sm:$0xff]
    %v708 = vld [vmem:[#allocation10 + $0x4a0] sm:$0xff]
    %v709 = vld [vmem:[#allocation10 + $0x4a8] sm:$0xff]
    %v710 = vld [vmem:[#allocation10 + $0x4b0] sm:$0xff]
    %v711 = vld [vmem:[#allocation10 + $0x4b8] sm:$0xff]
    %v712 = vld [vmem:[#allocation10 + $0x4c0] sm:$0xff]
    %v713 = vld [vmem:[#allocation10 + $0x4c8] sm:$0xff]
    %v714 = vld [vmem:[#allocation10 + $0x4d0] sm:$0xff]
    %v715 = vld [vmem:[#allocation10 + $0x4d8] sm:$0xff]
    %v716 = vld [vmem:[#allocation10 + $0x4e0] sm:$0xff]
    %v717 = vld [vmem:[#allocation10 + $0x4e8] sm:$0xff]
    %v718 = vld [vmem:[#allocation10 + $0x4f0] sm:$0xff]
    %v719 = vld [vmem:[#allocation10 + $0x4f8] sm:$0xff]
    %v720 = vld [vmem:[#allocation10 + $0x500] sm:$0xff]
    %v721 = vld [vmem:[#allocation10 + $0x508] sm:$0xff]
    %v722 = vld [vmem:[#allocation10 + $0x510] sm:$0xff]
    %v723 = vld [vmem:[#allocation10 + $0x518] sm:$0xff]
    %v724 = vld [vmem:[#allocation10 + $0x520] sm:$0xff]
    %v725 = vld [vmem:[#allocation10 + $0x528] sm:$0xff]
    %v726 = vld [vmem:[#allocation10 + $0x530] sm:$0xff]
    %v727 = vld [vmem:[#allocation10 + $0x538] sm:$0xff]
    %v728 = vld [vmem:[#allocation10 + $0x540] sm:$0xff]
    %v729 = vld [vmem:[#allocation10 + $0x548] sm:$0xff]
    %v730 = vld [vmem:[#allocation10 + $0x550] sm:$0xff]
    %v731 = vld [vmem:[#allocation10 + $0x558] sm:$0xff]
    %v732 = vld [vmem:[#allocation10 + $0x560] sm:$0xff]
    %v733 = vld [vmem:[#allocation10 + $0x568] sm:$0xff]
    %v734 = vld [vmem:[#allocation10 + $0x570] sm:$0xff]
    %v735 = vld [vmem:[#allocation10 + $0x578] sm:$0xff]
    %v736 = vld [vmem:[#allocation10 + $0x580] sm:$0xff]
    %v737 = vld [vmem:[#allocation10 + $0x588] sm:$0xff]
    %v738 = vld [vmem:[#allocation10 + $0x590] sm:$0xff]
    %v739 = vld [vmem:[#allocation10 + $0x598] sm:$0xff]
    %v740 = vld [vmem:[#allocation10 + $0x5a0] sm:$0xff]
    %v741 = vld [vmem:[#allocation10 + $0x5a8] sm:$0xff]
    %v742 = vld [vmem:[#allocation10 + $0x5b0] sm:$0xff]
    %v743 = vld [vmem:[#allocation10 + $0x5b8] sm:$0xff]
    %v744 = vld [vmem:[#allocation10 + $0x5c0] sm:$0xff]
    %v745 = vld [vmem:[#allocation10 + $0x5c8] sm:$0xff]
    %v746 = vld [vmem:[#allocation10 + $0x5d0] sm:$0xff]
    %v747 = vld [vmem:[#allocation10 + $0x5d8] sm:$0xff]
    %v748 = vld [vmem:[#allocation10 + $0x5e0] sm:$0xff]
    %v749 = vld [vmem:[#allocation10 + $0x5e8] sm:$0xff]
    %v750 = vld [vmem:[#allocation10 + $0x5f0] sm:$0xff]
    %v751 = vld [vmem:[#allocation10 + $0x5f8] sm:$0xff]
    %v752 = vld [vmem:[#allocation10 + $0x600] sm:$0xff]
    %v753 = vld [vmem:[#allocation10 + $0x608] sm:$0xff]
    %v754 = vld [vmem:[#allocation10 + $0x610] sm:$0xff]
    %v755 = vld [vmem:[#allocation10 + $0x618] sm:$0xff]
    %v756 = vld [vmem:[#allocation10 + $0x620] sm:$0xff]
    %v757 = vld [vmem:[#allocation10 + $0x628] sm:$0xff]
    %v758 = vld [vmem:[#allocation10 + $0x630] sm:$0xff]
    %v759 = vld [vmem:[#allocation10 + $0x638] sm:$0xff]
    %v760 = vld [vmem:[#allocation10 + $0x640] sm:$0xff]
    %v761 = vld [vmem:[#allocation10 + $0x648] sm:$0xff]
    %v762 = vld [vmem:[#allocation10 + $0x650] sm:$0xff]
    %v763 = vld [vmem:[#allocation10 + $0x658] sm:$0xff]
    %v764 = vld [vmem:[#allocation10 + $0x660] sm:$0xff]
    %v765 = vld [vmem:[#allocation10 + $0x668] sm:$0xff]
    %v766 = vld [vmem:[#allocation10 + $0x670] sm:$0xff]
    %v767 = vld [vmem:[#allocation10 + $0x678] sm:$0xff]
    %v768 = vld [vmem:[#allocation10 + $0x680] sm:$0xff]
    %v769 = vld [vmem:[#allocation10 + $0x688] sm:$0xff]
    %v770 = vld [vmem:[#allocation10 + $0x690] sm:$0xff]
    %v771 = vld [vmem:[#allocation10 + $0x698] sm:$0xff]
    %v772 = vld [vmem:[#allocation10 + $0x6a0] sm:$0xff]
    %v773 = vld [vmem:[#allocation10 + $0x6a8] sm:$0xff]
    %v774 = vld [vmem:[#allocation10 + $0x6b0] sm:$0xff]
    %v775 = vld [vmem:[#allocation10 + $0x6b8] sm:$0xff]
    %v776 = vld [vmem:[#allocation10 + $0x6c0] sm:$0xff]
    %v777 = vld [vmem:[#allocation10 + $0x6c8] sm:$0xff]
    %v778 = vld [vmem:[#allocation10 + $0x6d0] sm:$0xff]
    %v779 = vld [vmem:[#allocation10 + $0x6d8] sm:$0xff]
    %v780 = vld [vmem:[#allocation10 + $0x6e0] sm:$0xff]
    %v781 = vld [vmem:[#allocation10 + $0x6e8] sm:$0xff]
    %v782 = vld [vmem:[#allocation10 + $0x6f0] sm:$0xff]
    %v783 = vld [vmem:[#allocation10 + $0x6f8] sm:$0xff]
    %v784 = vld [vmem:[#allocation10 + $0x700] sm:$0xff]
    %v785 = vld [vmem:[#allocation10 + $0x708] sm:$0xff]
    %v786 = vld [vmem:[#allocation10 + $0x710] sm:$0xff]
    %v787 = vld [vmem:[#allocation10 + $0x718] sm:$0xff]
    %v788 = vld [vmem:[#allocation10 + $0x720] sm:$0xff]
    %v789 = vld [vmem:[#allocation10 + $0x728] sm:$0xff]
    %v790 = vld [vmem:[#allocation10 + $0x730] sm:$0xff]
    %v791 = vld [vmem:[#allocation10 + $0x738] sm:$0xff]
    %v792 = vld [vmem:[#allocation10 + $0x740] sm:$0xff]
    %v793 = vld [vmem:[#allocation10 + $0x748] sm:$0xff]
    %v794 = vld [vmem:[#allocation10 + $0x750] sm:$0xff]
    %v795 = vld [vmem:[#allocation10 + $0x758] sm:$0xff]
    %v796 = vld [vmem:[#allocation10 + $0x760] sm:$0xff]
    %v797 = vld [vmem:[#allocation10 + $0x768] sm:$0xff]
    %v798 = vld [vmem:[#allocation10 + $0x770] sm:$0xff]
    %v799 = vld [vmem:[#allocation10 + $0x778] sm:$0xff]
    %v800 = vld [vmem:[#allocation10 + $0x780] sm:$0xff]
    %v801 = vld [vmem:[#allocation10 + $0x788] sm:$0xff]
    %v802 = vld [vmem:[#allocation10 + $0x790] sm:$0xff]
    %v803 = vld [vmem:[#allocation10 + $0x798] sm:$0xff]
    %v804 = vld [vmem:[#allocation10 + $0x7a0] sm:$0xff]
    %v805 = vld [vmem:[#allocation10 + $0x7a8] sm:$0xff]
    %v806 = vld [vmem:[#allocation10 + $0x7b0] sm:$0xff]
    %v807 = vld [vmem:[#allocation10 + $0x7b8] sm:$0xff]
    %v808 = vld [vmem:[#allocation10 + $0x7c0] sm:$0xff]
    %v809 = vld [vmem:[#allocation10 + $0x7c8] sm:$0xff]
    %v810 = vld [vmem:[#allocation10 + $0x7d0] sm:$0xff]
    %v811 = vld [vmem:[#allocation10 + $0x7d8] sm:$0xff]
    %v812 = vld [vmem:[#allocation10 + $0x7e0] sm:$0xff]
    %v813 = vld [vmem:[#allocation10 + $0x7e8] sm:$0xff]
    %v814 = vld [vmem:[#allocation10 + $0x7f0] sm:$0xff]
    %v815 = vld [vmem:[#allocation10 + $0x7f8] sm:$0xff]
    %v816 = vld [vmem:[%s8] sm:$0xff]
    %v818 = vlaneseq
    %v819 = vshrl.u32 %v818, 7
    %v820 = vsub.s32 0, %v819
    %v821 = vrot.slane %v816, %v820
    %v822 = vlaneseq
    %v823 = vshrl.u32 %v822, 7
    %v824 = vsub.s32 1, %v823
    %v825 = vrot.slane %v816, %v824
    %v826 = vlaneseq
    %v827 = vshrl.u32 %v826, 7
    %v828 = vsub.s32 2, %v827
    %v829 = vrot.slane %v816, %v828
    %v830 = vlaneseq
    %v831 = vshrl.u32 %v830, 7
    %v832 = vsub.s32 3, %v831
    %v833 = vrot.slane %v816, %v832
    %v834 = vlaneseq
    %v835 = vshrl.u32 %v834, 7
    %v836 = vsub.s32 4, %v835
    %v837 = vrot.slane %v816, %v836
    %v838 = vlaneseq
    %v839 = vshrl.u32 %v838, 7
    %v840 = vsub.s32 5, %v839
    %v841 = vrot.slane %v816, %v840
    %v842 = vlaneseq
    %v843 = vshrl.u32 %v842, 7
    %v844 = vsub.s32 6, %v843
    %v845 = vrot.slane %v816, %v844
    %v846 = vlaneseq
    %v847 = vshrl.u32 %v846, 7
    %v848 = vsub.s32 7, %v847
    %v849 = vrot.slane %v816, %v848
    %v1114 = vunpack.c.l.b16 %v560
    %v1115 = vunpack.c.h.b16 %v560
    %v1116 = vunpack.c.l.b16 %v561
    %v1117 = vunpack.c.h.b16 %v561
    %v1118 = vunpack.c.l.b16 %v562
    %v1119 = vunpack.c.h.b16 %v562
    %v1120 = vunpack.c.l.b16 %v563
    %v1121 = vunpack.c.h.b16 %v563
    %v1122 = vunpack.c.l.b16 %v564
    %v1123 = vunpack.c.h.b16 %v564
    %v1124 = vunpack.c.l.b16 %v565
    %v1125 = vunpack.c.h.b16 %v565
    %v1126 = vunpack.c.l.b16 %v566
    %v1127 = vunpack.c.h.b16 %v566
    %v1128 = vunpack.c.l.b16 %v567
    %v1129 = vunpack.c.h.b16 %v567
    %v1130 = vunpack.c.l.b16 %v568
    %v1131 = vunpack.c.h.b16 %v568
    %v1132 = vunpack.c.l.b16 %v569
    %v1133 = vunpack.c.h.b16 %v569
    %v1134 = vunpack.c.l.b16 %v570
    %v1135 = vunpack.c.h.b16 %v570
    %v1136 = vunpack.c.l.b16 %v571
    %v1137 = vunpack.c.h.b16 %v571
    %v1138 = vunpack.c.l.b16 %v572
    %v1139 = vunpack.c.h.b16 %v572
    %v1140 = vunpack.c.l.b16 %v573
    %v1141 = vunpack.c.h.b16 %v573
    %v1142 = vunpack.c.l.b16 %v574
    %v1143 = vunpack.c.h.b16 %v574
    %v1144 = vunpack.c.l.b16 %v575
    %v1145 = vunpack.c.h.b16 %v575
    %v1146 = vunpack.c.l.b16 %v576
    %v1147 = vunpack.c.h.b16 %v576
    %v1148 = vunpack.c.l.b16 %v577
    %v1149 = vunpack.c.h.b16 %v577
    %v1150 = vunpack.c.l.b16 %v578
    %v1151 = vunpack.c.h.b16 %v578
    %v1152 = vunpack.c.l.b16 %v579
    %v1153 = vunpack.c.h.b16 %v579
    %v1154 = vunpack.c.l.b16 %v580
    %v1155 = vunpack.c.h.b16 %v580
    %v1156 = vunpack.c.l.b16 %v581
    %v1157 = vunpack.c.h.b16 %v581
    %v1158 = vunpack.c.l.b16 %v582
    %v1159 = vunpack.c.h.b16 %v582
    %v1160 = vunpack.c.l.b16 %v583
    %v1161 = vunpack.c.h.b16 %v583
    %v1162 = vunpack.c.l.b16 %v584
    %v1163 = vunpack.c.h.b16 %v584
    %v1164 = vunpack.c.l.b16 %v585
    %v1165 = vunpack.c.h.b16 %v585
    %v1166 = vunpack.c.l.b16 %v586
    %v1167 = vunpack.c.h.b16 %v586
    %v1168 = vunpack.c.l.b16 %v587
    %v1169 = vunpack.c.h.b16 %v587
    %v1170 = vunpack.c.l.b16 %v588
    %v1171 = vunpack.c.h.b16 %v588
    %v1172 = vunpack.c.l.b16 %v589
    %v1173 = vunpack.c.h.b16 %v589
    %v1174 = vunpack.c.l.b16 %v590
    %v1175 = vunpack.c.h.b16 %v590
    %v1176 = vunpack.c.l.b16 %v591
    %v1177 = vunpack.c.h.b16 %v591
    %v1178 = vunpack.c.l.b16 %v592
    %v1179 = vunpack.c.h.b16 %v592
    %v1180 = vunpack.c.l.b16 %v593
    %v1181 = vunpack.c.h.b16 %v593
    %v1182 = vunpack.c.l.b16 %v594
    %v1183 = vunpack.c.h.b16 %v594
    %v1184 = vunpack.c.l.b16 %v595
    %v1185 = vunpack.c.h.b16 %v595
    %v1186 = vunpack.c.l.b16 %v596
    %v1187 = vunpack.c.h.b16 %v596
    %v1188 = vunpack.c.l.b16 %v597
    %v1189 = vunpack.c.h.b16 %v597
    %v1190 = vunpack.c.l.b16 %v598
    %v1191 = vunpack.c.h.b16 %v598
    %v1192 = vunpack.c.l.b16 %v599
    %v1193 = vunpack.c.h.b16 %v599
    %v1194 = vunpack.c.l.b16 %v600
    %v1195 = vunpack.c.h.b16 %v600
    %v1196 = vunpack.c.l.b16 %v601
    %v1197 = vunpack.c.h.b16 %v601
    %v1198 = vunpack.c.l.b16 %v602
    %v1199 = vunpack.c.h.b16 %v602
    %v1200 = vunpack.c.l.b16 %v603
    %v1201 = vunpack.c.h.b16 %v603
    %v1202 = vunpack.c.l.b16 %v604
    %v1203 = vunpack.c.h.b16 %v604
    %v1204 = vunpack.c.l.b16 %v605
    %v1205 = vunpack.c.h.b16 %v605
    %v1206 = vunpack.c.l.b16 %v606
    %v1207 = vunpack.c.h.b16 %v606
    %v1208 = vunpack.c.l.b16 %v607
    %v1209 = vunpack.c.h.b16 %v607
    %v1210 = vunpack.c.l.b16 %v608
    %v1211 = vunpack.c.h.b16 %v608
    %v1212 = vunpack.c.l.b16 %v609
    %v1213 = vunpack.c.h.b16 %v609
    %v1214 = vunpack.c.l.b16 %v610
    %v1215 = vunpack.c.h.b16 %v610
    %v1216 = vunpack.c.l.b16 %v611
    %v1217 = vunpack.c.h.b16 %v611
    %v1218 = vunpack.c.l.b16 %v612
    %v1219 = vunpack.c.h.b16 %v612
    %v1220 = vunpack.c.l.b16 %v613
    %v1221 = vunpack.c.h.b16 %v613
    %v1222 = vunpack.c.l.b16 %v614
    %v1223 = vunpack.c.h.b16 %v614
    %v1224 = vunpack.c.l.b16 %v615
    %v1225 = vunpack.c.h.b16 %v615
    %v1226 = vunpack.c.l.b16 %v616
    %v1227 = vunpack.c.h.b16 %v616
    %v1228 = vunpack.c.l.b16 %v617
    %v1229 = vunpack.c.h.b16 %v617
    %v1230 = vunpack.c.l.b16 %v618
    %v1231 = vunpack.c.h.b16 %v618
    %v1232 = vunpack.c.l.b16 %v619
    %v1233 = vunpack.c.h.b16 %v619
    %v1234 = vunpack.c.l.b16 %v620
    %v1235 = vunpack.c.h.b16 %v620
    %v1236 = vunpack.c.l.b16 %v621
    %v1237 = vunpack.c.h.b16 %v621
    %v1238 = vunpack.c.l.b16 %v622
    %v1239 = vunpack.c.h.b16 %v622
    %v1240 = vunpack.c.l.b16 %v623
    %v1241 = vunpack.c.h.b16 %v623
    %v1242 = vunpack.c.l.b16 %v624
    %v1243 = vunpack.c.h.b16 %v624
    %v1244 = vunpack.c.l.b16 %v625
    %v1245 = vunpack.c.h.b16 %v625
    %v1246 = vunpack.c.l.b16 %v626
    %v1247 = vunpack.c.h.b16 %v626
    %v1248 = vunpack.c.l.b16 %v627
    %v1249 = vunpack.c.h.b16 %v627
    %v1250 = vunpack.c.l.b16 %v628
    %v1251 = vunpack.c.h.b16 %v628
    %v1252 = vunpack.c.l.b16 %v629
    %v1253 = vunpack.c.h.b16 %v629
    %v1254 = vunpack.c.l.b16 %v630
    %v1255 = vunpack.c.h.b16 %v630
    %v1256 = vunpack.c.l.b16 %v631
    %v1257 = vunpack.c.h.b16 %v631
    %v1258 = vunpack.c.l.b16 %v632
    %v1259 = vunpack.c.h.b16 %v632
    %v1260 = vunpack.c.l.b16 %v633
    %v1261 = vunpack.c.h.b16 %v633
    %v1262 = vunpack.c.l.b16 %v634
    %v1263 = vunpack.c.h.b16 %v634
    %v1264 = vunpack.c.l.b16 %v635
    %v1265 = vunpack.c.h.b16 %v635
    %v1266 = vunpack.c.l.b16 %v636
    %v1267 = vunpack.c.h.b16 %v636
    %v1268 = vunpack.c.l.b16 %v637
    %v1269 = vunpack.c.h.b16 %v637
    %v1270 = vunpack.c.l.b16 %v638
    %v1271 = vunpack.c.h.b16 %v638
    %v1272 = vunpack.c.l.b16 %v639
    %v1273 = vunpack.c.h.b16 %v639
    %v1274 = vunpack.c.l.b16 %v640
    %v1275 = vunpack.c.h.b16 %v640
    %v1276 = vunpack.c.l.b16 %v641
    %v1277 = vunpack.c.h.b16 %v641
    %v1278 = vunpack.c.l.b16 %v642
    %v1279 = vunpack.c.h.b16 %v642
    %v1280 = vunpack.c.l.b16 %v643
    %v1281 = vunpack.c.h.b16 %v643
    %v1282 = vunpack.c.l.b16 %v644
    %v1283 = vunpack.c.h.b16 %v644
    %v1284 = vunpack.c.l.b16 %v645
    %v1285 = vunpack.c.h.b16 %v645
    %v1286 = vunpack.c.l.b16 %v646
    %v1287 = vunpack.c.h.b16 %v646
    %v1288 = vunpack.c.l.b16 %v647
    %v1289 = vunpack.c.h.b16 %v647
    %v1290 = vunpack.c.l.b16 %v648
    %v1291 = vunpack.c.h.b16 %v648
    %v1292 = vunpack.c.l.b16 %v649
    %v1293 = vunpack.c.h.b16 %v649
    %v1294 = vunpack.c.l.b16 %v650
    %v1295 = vunpack.c.h.b16 %v650
    %v1296 = vunpack.c.l.b16 %v651
    %v1297 = vunpack.c.h.b16 %v651
    %v1298 = vunpack.c.l.b16 %v652
    %v1299 = vunpack.c.h.b16 %v652
    %v1300 = vunpack.c.l.b16 %v653
    %v1301 = vunpack.c.h.b16 %v653
    %v1302 = vunpack.c.l.b16 %v654
    %v1303 = vunpack.c.h.b16 %v654
    %v1304 = vunpack.c.l.b16 %v655
    %v1305 = vunpack.c.h.b16 %v655
    %v1306 = vunpack.c.l.b16 %v656
    %v1307 = vunpack.c.h.b16 %v656
    %v1308 = vunpack.c.l.b16 %v657
    %v1309 = vunpack.c.h.b16 %v657
    %v1310 = vunpack.c.l.b16 %v658
    %v1311 = vunpack.c.h.b16 %v658
    %v1312 = vunpack.c.l.b16 %v659
    %v1313 = vunpack.c.h.b16 %v659
    %v1314 = vunpack.c.l.b16 %v660
    %v1315 = vunpack.c.h.b16 %v660
    %v1316 = vunpack.c.l.b16 %v661
    %v1317 = vunpack.c.h.b16 %v661
    %v1318 = vunpack.c.l.b16 %v662
    %v1319 = vunpack.c.h.b16 %v662
    %v1320 = vunpack.c.l.b16 %v663
    %v1321 = vunpack.c.h.b16 %v663
    %v1322 = vunpack.c.l.b16 %v664
    %v1323 = vunpack.c.h.b16 %v664
    %v1324 = vunpack.c.l.b16 %v665
    %v1325 = vunpack.c.h.b16 %v665
    %v1326 = vunpack.c.l.b16 %v666
    %v1327 = vunpack.c.h.b16 %v666
    %v1328 = vunpack.c.l.b16 %v667
    %v1329 = vunpack.c.h.b16 %v667
    %v1330 = vunpack.c.l.b16 %v668
    %v1331 = vunpack.c.h.b16 %v668
    %v1332 = vunpack.c.l.b16 %v669
    %v1333 = vunpack.c.h.b16 %v669
    %v1334 = vunpack.c.l.b16 %v670
    %v1335 = vunpack.c.h.b16 %v670
    %v1336 = vunpack.c.l.b16 %v671
    %v1337 = vunpack.c.h.b16 %v671
    %v1338 = vunpack.c.l.b16 %v672
    %v1339 = vunpack.c.h.b16 %v672
    %v1340 = vunpack.c.l.b16 %v673
    %v1341 = vunpack.c.h.b16 %v673
    %v1342 = vunpack.c.l.b16 %v674
    %v1343 = vunpack.c.h.b16 %v674
    %v1344 = vunpack.c.l.b16 %v675
    %v1345 = vunpack.c.h.b16 %v675
    %v1346 = vunpack.c.l.b16 %v676
    %v1347 = vunpack.c.h.b16 %v676
    %v1348 = vunpack.c.l.b16 %v677
    %v1349 = vunpack.c.h.b16 %v677
    %v1350 = vunpack.c.l.b16 %v678
    %v1351 = vunpack.c.h.b16 %v678
    %v1352 = vunpack.c.l.b16 %v679
    %v1353 = vunpack.c.h.b16 %v679
    %v1354 = vunpack.c.l.b16 %v680
    %v1355 = vunpack.c.h.b16 %v680
    %v1356 = vunpack.c.l.b16 %v681
    %v1357 = vunpack.c.h.b16 %v681
    %v1358 = vunpack.c.l.b16 %v682
    %v1359 = vunpack.c.h.b16 %v682
    %v1360 = vunpack.c.l.b16 %v683
    %v1361 = vunpack.c.h.b16 %v683
    %v1362 = vunpack.c.l.b16 %v684
    %v1363 = vunpack.c.h.b16 %v684
    %v1364 = vunpack.c.l.b16 %v685
    %v1365 = vunpack.c.h.b16 %v685
    %v1366 = vunpack.c.l.b16 %v686
    %v1367 = vunpack.c.h.b16 %v686
    %v1368 = vunpack.c.l.b16 %v687
    %v1369 = vunpack.c.h.b16 %v687
    %v1370 = vunpack.c.l.b16 %v688
    %v1371 = vunpack.c.h.b16 %v688
    %v1372 = vunpack.c.l.b16 %v689
    %v1373 = vunpack.c.h.b16 %v689
    %v1374 = vunpack.c.l.b16 %v690
    %v1375 = vunpack.c.h.b16 %v690
    %v1376 = vunpack.c.l.b16 %v691
    %v1377 = vunpack.c.h.b16 %v691
    %v1378 = vunpack.c.l.b16 %v692
    %v1379 = vunpack.c.h.b16 %v692
    %v1380 = vunpack.c.l.b16 %v693
    %v1381 = vunpack.c.h.b16 %v693
    %v1382 = vunpack.c.l.b16 %v694
    %v1383 = vunpack.c.h.b16 %v694
    %v1384 = vunpack.c.l.b16 %v695
    %v1385 = vunpack.c.h.b16 %v695
    %v1386 = vunpack.c.l.b16 %v696
    %v1387 = vunpack.c.h.b16 %v696
    %v1388 = vunpack.c.l.b16 %v697
    %v1389 = vunpack.c.h.b16 %v697
    %v1390 = vunpack.c.l.b16 %v698
    %v1391 = vunpack.c.h.b16 %v698
    %v1392 = vunpack.c.l.b16 %v699
    %v1393 = vunpack.c.h.b16 %v699
    %v1394 = vunpack.c.l.b16 %v700
    %v1395 = vunpack.c.h.b16 %v700
    %v1396 = vunpack.c.l.b16 %v701
    %v1397 = vunpack.c.h.b16 %v701
    %v1398 = vunpack.c.l.b16 %v702
    %v1399 = vunpack.c.h.b16 %v702
    %v1400 = vunpack.c.l.b16 %v703
    %v1401 = vunpack.c.h.b16 %v703
    %v1402 = vunpack.c.l.b16 %v704
    %v1403 = vunpack.c.h.b16 %v704
    %v1404 = vunpack.c.l.b16 %v705
    %v1405 = vunpack.c.h.b16 %v705
    %v1406 = vunpack.c.l.b16 %v706
    %v1407 = vunpack.c.h.b16 %v706
    %v1408 = vunpack.c.l.b16 %v707
    %v1409 = vunpack.c.h.b16 %v707
    %v1410 = vunpack.c.l.b16 %v708
    %v1411 = vunpack.c.h.b16 %v708
    %v1412 = vunpack.c.l.b16 %v709
    %v1413 = vunpack.c.h.b16 %v709
    %v1414 = vunpack.c.l.b16 %v710
    %v1415 = vunpack.c.h.b16 %v710
    %v1416 = vunpack.c.l.b16 %v711
    %v1417 = vunpack.c.h.b16 %v711
    %v1418 = vunpack.c.l.b16 %v712
    %v1419 = vunpack.c.h.b16 %v712
    %v1420 = vunpack.c.l.b16 %v713
    %v1421 = vunpack.c.h.b16 %v713
    %v1422 = vunpack.c.l.b16 %v714
    %v1423 = vunpack.c.h.b16 %v714
    %v1424 = vunpack.c.l.b16 %v715
    %v1425 = vunpack.c.h.b16 %v715
    %v1426 = vunpack.c.l.b16 %v716
    %v1427 = vunpack.c.h.b16 %v716
    %v1428 = vunpack.c.l.b16 %v717
    %v1429 = vunpack.c.h.b16 %v717
    %v1430 = vunpack.c.l.b16 %v718
    %v1431 = vunpack.c.h.b16 %v718
    %v1432 = vunpack.c.l.b16 %v719
    %v1433 = vunpack.c.h.b16 %v719
    %v1434 = vunpack.c.l.b16 %v720
    %v1435 = vunpack.c.h.b16 %v720
    %v1436 = vunpack.c.l.b16 %v721
    %v1437 = vunpack.c.h.b16 %v721
    %v1438 = vunpack.c.l.b16 %v722
    %v1439 = vunpack.c.h.b16 %v722
    %v1440 = vunpack.c.l.b16 %v723
    %v1441 = vunpack.c.h.b16 %v723
    %v1442 = vunpack.c.l.b16 %v724
    %v1443 = vunpack.c.h.b16 %v724
    %v1444 = vunpack.c.l.b16 %v725
    %v1445 = vunpack.c.h.b16 %v725
    %v1446 = vunpack.c.l.b16 %v726
    %v1447 = vunpack.c.h.b16 %v726
    %v1448 = vunpack.c.l.b16 %v727
    %v1449 = vunpack.c.h.b16 %v727
    %v1450 = vunpack.c.l.b16 %v728
    %v1451 = vunpack.c.h.b16 %v728
    %v1452 = vunpack.c.l.b16 %v729
    %v1453 = vunpack.c.h.b16 %v729
    %v1454 = vunpack.c.l.b16 %v730
    %v1455 = vunpack.c.h.b16 %v730
    %v1456 = vunpack.c.l.b16 %v731
    %v1457 = vunpack.c.h.b16 %v731
    %v1458 = vunpack.c.l.b16 %v732
    %v1459 = vunpack.c.h.b16 %v732
    %v1460 = vunpack.c.l.b16 %v733
    %v1461 = vunpack.c.h.b16 %v733
    %v1462 = vunpack.c.l.b16 %v734
    %v1463 = vunpack.c.h.b16 %v734
    %v1464 = vunpack.c.l.b16 %v735
    %v1465 = vunpack.c.h.b16 %v735
    %v1466 = vunpack.c.l.b16 %v736
    %v1467 = vunpack.c.h.b16 %v736
    %v1468 = vunpack.c.l.b16 %v737
    %v1469 = vunpack.c.h.b16 %v737
    %v1470 = vunpack.c.l.b16 %v738
    %v1471 = vunpack.c.h.b16 %v738
    %v1472 = vunpack.c.l.b16 %v739
    %v1473 = vunpack.c.h.b16 %v739
    %v1474 = vunpack.c.l.b16 %v740
    %v1475 = vunpack.c.h.b16 %v740
    %v1476 = vunpack.c.l.b16 %v741
    %v1477 = vunpack.c.h.b16 %v741
    %v1478 = vunpack.c.l.b16 %v742
    %v1479 = vunpack.c.h.b16 %v742
    %v1480 = vunpack.c.l.b16 %v743
    %v1481 = vunpack.c.h.b16 %v743
    %v1482 = vunpack.c.l.b16 %v744
    %v1483 = vunpack.c.h.b16 %v744
    %v1484 = vunpack.c.l.b16 %v745
    %v1485 = vunpack.c.h.b16 %v745
    %v1486 = vunpack.c.l.b16 %v746
    %v1487 = vunpack.c.h.b16 %v746
    %v1488 = vunpack.c.l.b16 %v747
    %v1489 = vunpack.c.h.b16 %v747
    %v1490 = vunpack.c.l.b16 %v748
    %v1491 = vunpack.c.h.b16 %v748
    %v1492 = vunpack.c.l.b16 %v749
    %v1493 = vunpack.c.h.b16 %v749
    %v1494 = vunpack.c.l.b16 %v750
    %v1495 = vunpack.c.h.b16 %v750
    %v1496 = vunpack.c.l.b16 %v751
    %v1497 = vunpack.c.h.b16 %v751
    %v1498 = vunpack.c.l.b16 %v752
    %v1499 = vunpack.c.h.b16 %v752
    %v1500 = vunpack.c.l.b16 %v753
    %v1501 = vunpack.c.h.b16 %v753
    %v1502 = vunpack.c.l.b16 %v754
    %v1503 = vunpack.c.h.b16 %v754
    %v1504 = vunpack.c.l.b16 %v755
    %v1505 = vunpack.c.h.b16 %v755
    %v1506 = vunpack.c.l.b16 %v756
    %v1507 = vunpack.c.h.b16 %v756
    %v1508 = vunpack.c.l.b16 %v757
    %v1509 = vunpack.c.h.b16 %v757
    %v1510 = vunpack.c.l.b16 %v758
    %v1511 = vunpack.c.h.b16 %v758
    %v1512 = vunpack.c.l.b16 %v759
    %v1513 = vunpack.c.h.b16 %v759
    %v1514 = vunpack.c.l.b16 %v760
    %v1515 = vunpack.c.h.b16 %v760
    %v1516 = vunpack.c.l.b16 %v761
    %v1517 = vunpack.c.h.b16 %v761
    %v1518 = vunpack.c.l.b16 %v762
    %v1519 = vunpack.c.h.b16 %v762
    %v1520 = vunpack.c.l.b16 %v763
    %v1521 = vunpack.c.h.b16 %v763
    %v1522 = vunpack.c.l.b16 %v764
    %v1523 = vunpack.c.h.b16 %v764
    %v1524 = vunpack.c.l.b16 %v765
    %v1525 = vunpack.c.h.b16 %v765
    %v1526 = vunpack.c.l.b16 %v766
    %v1527 = vunpack.c.h.b16 %v766
    %v1528 = vunpack.c.l.b16 %v767
    %v1529 = vunpack.c.h.b16 %v767
    %v1530 = vunpack.c.l.b16 %v768
    %v1531 = vunpack.c.h.b16 %v768
    %v1532 = vunpack.c.l.b16 %v769
    %v1533 = vunpack.c.h.b16 %v769
    %v1534 = vunpack.c.l.b16 %v770
    %v1535 = vunpack.c.h.b16 %v770
    %v1536 = vunpack.c.l.b16 %v771
    %v1537 = vunpack.c.h.b16 %v771
    %v1538 = vunpack.c.l.b16 %v772
    %v1539 = vunpack.c.h.b16 %v772
    %v1540 = vunpack.c.l.b16 %v773
    %v1541 = vunpack.c.h.b16 %v773
    %v1542 = vunpack.c.l.b16 %v774
    %v1543 = vunpack.c.h.b16 %v774
    %v1544 = vunpack.c.l.b16 %v775
    %v1545 = vunpack.c.h.b16 %v775
    %v1546 = vunpack.c.l.b16 %v776
    %v1547 = vunpack.c.h.b16 %v776
    %v1548 = vunpack.c.l.b16 %v777
    %v1549 = vunpack.c.h.b16 %v777
    %v1550 = vunpack.c.l.b16 %v778
    %v1551 = vunpack.c.h.b16 %v778
    %v1552 = vunpack.c.l.b16 %v779
    %v1553 = vunpack.c.h.b16 %v779
    %v1554 = vunpack.c.l.b16 %v780
    %v1555 = vunpack.c.h.b16 %v780
    %v1556 = vunpack.c.l.b16 %v781
    %v1557 = vunpack.c.h.b16 %v781
    %v1558 = vunpack.c.l.b16 %v782
    %v1559 = vunpack.c.h.b16 %v782
    %v1560 = vunpack.c.l.b16 %v783
    %v1561 = vunpack.c.h.b16 %v783
    %v1562 = vunpack.c.l.b16 %v784
    %v1563 = vunpack.c.h.b16 %v784
    %v1564 = vunpack.c.l.b16 %v785
    %v1565 = vunpack.c.h.b16 %v785
    %v1566 = vunpack.c.l.b16 %v786
    %v1567 = vunpack.c.h.b16 %v786
    %v1568 = vunpack.c.l.b16 %v787
    %v1569 = vunpack.c.h.b16 %v787
    %v1570 = vunpack.c.l.b16 %v788
    %v1571 = vunpack.c.h.b16 %v788
    %v1572 = vunpack.c.l.b16 %v789
    %v1573 = vunpack.c.h.b16 %v789
    %v1574 = vunpack.c.l.b16 %v790
    %v1575 = vunpack.c.h.b16 %v790
    %v1576 = vunpack.c.l.b16 %v791
    %v1577 = vunpack.c.h.b16 %v791
    %v1578 = vunpack.c.l.b16 %v792
    %v1579 = vunpack.c.h.b16 %v792
    %v1580 = vunpack.c.l.b16 %v793
    %v1581 = vunpack.c.h.b16 %v793
    %v1582 = vunpack.c.l.b16 %v794
    %v1583 = vunpack.c.h.b16 %v794
    %v1584 = vunpack.c.l.b16 %v795
    %v1585 = vunpack.c.h.b16 %v795
    %v1586 = vunpack.c.l.b16 %v796
    %v1587 = vunpack.c.h.b16 %v796
    %v1588 = vunpack.c.l.b16 %v797
    %v1589 = vunpack.c.h.b16 %v797
    %v1590 = vunpack.c.l.b16 %v798
    %v1591 = vunpack.c.h.b16 %v798
    %v1592 = vunpack.c.l.b16 %v799
    %v1593 = vunpack.c.h.b16 %v799
    %v1594 = vunpack.c.l.b16 %v800
    %v1595 = vunpack.c.h.b16 %v800
    %v1596 = vunpack.c.l.b16 %v801
    %v1597 = vunpack.c.h.b16 %v801
    %v1598 = vunpack.c.l.b16 %v802
    %v1599 = vunpack.c.h.b16 %v802
    %v1600 = vunpack.c.l.b16 %v803
    %v1601 = vunpack.c.h.b16 %v803
    %v1602 = vunpack.c.l.b16 %v804
    %v1603 = vunpack.c.h.b16 %v804
    %v1604 = vunpack.c.l.b16 %v805
    %v1605 = vunpack.c.h.b16 %v805
    %v1606 = vunpack.c.l.b16 %v806
    %v1607 = vunpack.c.h.b16 %v806
    %v1608 = vunpack.c.l.b16 %v807
    %v1609 = vunpack.c.h.b16 %v807
    %v1610 = vunpack.c.l.b16 %v808
    %v1611 = vunpack.c.h.b16 %v808
    %v1612 = vunpack.c.l.b16 %v809
    %v1613 = vunpack.c.h.b16 %v809
    %v1614 = vunpack.c.l.b16 %v810
    %v1615 = vunpack.c.h.b16 %v810
    %v1616 = vunpack.c.l.b16 %v811
    %v1617 = vunpack.c.h.b16 %v811
    %v1618 = vunpack.c.l.b16 %v812
    %v1619 = vunpack.c.h.b16 %v812
    %v1620 = vunpack.c.l.b16 %v813
    %v1621 = vunpack.c.h.b16 %v813
    %v1622 = vunpack.c.l.b16 %v814
    %v1623 = vunpack.c.h.b16 %v814
    %v1624 = vunpack.c.l.b16 %v815
    %v1625 = vunpack.c.h.b16 %v815
    %v1626 = vpack.c.b16 %v1122, %v1114
    %v1627 = vpack.c.b16 %v1123, %v1115
    %v1628 = vpack.c.b16 %v1124, %v1116
    %v1629 = vpack.c.b16 %v1125, %v1117
    %v1630 = vpack.c.b16 %v1126, %v1118
    %v1631 = vpack.c.b16 %v1127, %v1119
    %v1632 = vpack.c.b16 %v1128, %v1120
    %v1633 = vpack.c.b16 %v1129, %v1121
    %v1634 = vpack.c.b16 %v1138, %v1130
    %v1635 = vpack.c.b16 %v1139, %v1131
    %v1636 = vpack.c.b16 %v1140, %v1132
    %v1637 = vpack.c.b16 %v1141, %v1133
    %v1638 = vpack.c.b16 %v1142, %v1134
    %v1639 = vpack.c.b16 %v1143, %v1135
    %v1640 = vpack.c.b16 %v1144, %v1136
    %v1641 = vpack.c.b16 %v1145, %v1137
    %v1642 = vpack.c.b16 %v1154, %v1146
    %v1643 = vpack.c.b16 %v1155, %v1147
    %v1644 = vpack.c.b16 %v1156, %v1148
    %v1645 = vpack.c.b16 %v1157, %v1149
    %v1646 = vpack.c.b16 %v1158, %v1150
    %v1647 = vpack.c.b16 %v1159, %v1151
    %v1648 = vpack.c.b16 %v1160, %v1152
    %v1649 = vpack.c.b16 %v1161, %v1153
    %v1650 = vpack.c.b16 %v1170, %v1162
    %v1651 = vpack.c.b16 %v1171, %v1163
    %v1652 = vpack.c.b16 %v1172, %v1164
    %v1653 = vpack.c.b16 %v1173, %v1165
    %v1654 = vpack.c.b16 %v1174, %v1166
    %v1655 = vpack.c.b16 %v1175, %v1167
    %v1656 = vpack.c.b16 %v1176, %v1168
    %v1657 = vpack.c.b16 %v1177, %v1169
    %v1658 = vpack.c.b16 %v1186, %v1178
    %v1659 = vpack.c.b16 %v1187, %v1179
    %v1660 = vpack.c.b16 %v1188, %v1180
    %v1661 = vpack.c.b16 %v1189, %v1181
    %v1662 = vpack.c.b16 %v1190, %v1182
    %v1663 = vpack.c.b16 %v1191, %v1183
    %v1664 = vpack.c.b16 %v1192, %v1184
    %v1665 = vpack.c.b16 %v1193, %v1185
    %v1666 = vpack.c.b16 %v1202, %v1194
    %v1667 = vpack.c.b16 %v1203, %v1195
    %v1668 = vpack.c.b16 %v1204, %v1196
    %v1669 = vpack.c.b16 %v1205, %v1197
    %v1670 = vpack.c.b16 %v1206, %v1198
    %v1671 = vpack.c.b16 %v1207, %v1199
    %v1672 = vpack.c.b16 %v1208, %v1200
    %v1673 = vpack.c.b16 %v1209, %v1201
    %v1674 = vpack.c.b16 %v1218, %v1210
    %v1675 = vpack.c.b16 %v1219, %v1211
    %v1676 = vpack.c.b16 %v1220, %v1212
    %v1677 = vpack.c.b16 %v1221, %v1213
    %v1678 = vpack.c.b16 %v1222, %v1214
    %v1679 = vpack.c.b16 %v1223, %v1215
    %v1680 = vpack.c.b16 %v1224, %v1216
    %v1681 = vpack.c.b16 %v1225, %v1217
    %v1682 = vpack.c.b16 %v1234, %v1226
    %v1683 = vpack.c.b16 %v1235, %v1227
    %v1684 = vpack.c.b16 %v1236, %v1228
    %v1685 = vpack.c.b16 %v1237, %v1229
    %v1686 = vpack.c.b16 %v1238, %v1230
    %v1687 = vpack.c.b16 %v1239, %v1231
    %v1688 = vpack.c.b16 %v1240, %v1232
    %v1689 = vpack.c.b16 %v1241, %v1233
    %v1690 = vpack.c.b16 %v1250, %v1242
    %v1691 = vpack.c.b16 %v1251, %v1243
    %v1692 = vpack.c.b16 %v1252, %v1244
    %v1693 = vpack.c.b16 %v1253, %v1245
    %v1694 = vpack.c.b16 %v1254, %v1246
    %v1695 = vpack.c.b16 %v1255, %v1247
    %v1696 = vpack.c.b16 %v1256, %v1248
    %v1697 = vpack.c.b16 %v1257, %v1249
    %v1698 = vpack.c.b16 %v1266, %v1258
    %v1699 = vpack.c.b16 %v1267, %v1259
    %v1700 = vpack.c.b16 %v1268, %v1260
    %v1701 = vpack.c.b16 %v1269, %v1261
    %v1702 = vpack.c.b16 %v1270, %v1262
    %v1703 = vpack.c.b16 %v1271, %v1263
    %v1704 = vpack.c.b16 %v1272, %v1264
    %v1705 = vpack.c.b16 %v1273, %v1265
    %v1706 = vpack.c.b16 %v1282, %v1274
    %v1707 = vpack.c.b16 %v1283, %v1275
    %v1708 = vpack.c.b16 %v1284, %v1276
    %v1709 = vpack.c.b16 %v1285, %v1277
    %v1710 = vpack.c.b16 %v1286, %v1278
    %v1711 = vpack.c.b16 %v1287, %v1279
    %v1712 = vpack.c.b16 %v1288, %v1280
    %v1713 = vpack.c.b16 %v1289, %v1281
    %v1714 = vpack.c.b16 %v1298, %v1290
    %v1715 = vpack.c.b16 %v1299, %v1291
    %v1716 = vpack.c.b16 %v1300, %v1292
    %v1717 = vpack.c.b16 %v1301, %v1293
    %v1718 = vpack.c.b16 %v1302, %v1294
    %v1719 = vpack.c.b16 %v1303, %v1295
    %v1720 = vpack.c.b16 %v1304, %v1296
    %v1721 = vpack.c.b16 %v1305, %v1297
    %v1722 = vpack.c.b16 %v1314, %v1306
    %v1723 = vpack.c.b16 %v1315, %v1307
    %v1724 = vpack.c.b16 %v1316, %v1308
    %v1725 = vpack.c.b16 %v1317, %v1309
    %v1726 = vpack.c.b16 %v1318, %v1310
    %v1727 = vpack.c.b16 %v1319, %v1311
    %v1728 = vpack.c.b16 %v1320, %v1312
    %v1729 = vpack.c.b16 %v1321, %v1313
    %v1730 = vpack.c.b16 %v1330, %v1322
    %v1731 = vpack.c.b16 %v1331, %v1323
    %v1732 = vpack.c.b16 %v1332, %v1324
    %v1733 = vpack.c.b16 %v1333, %v1325
    %v1734 = vpack.c.b16 %v1334, %v1326
    %v1735 = vpack.c.b16 %v1335, %v1327
    %v1736 = vpack.c.b16 %v1336, %v1328
    %v1737 = vpack.c.b16 %v1337, %v1329
    %v1738 = vpack.c.b16 %v1346, %v1338
    %v1739 = vpack.c.b16 %v1347, %v1339
    %v1740 = vpack.c.b16 %v1348, %v1340
    %v1741 = vpack.c.b16 %v1349, %v1341
    %v1742 = vpack.c.b16 %v1350, %v1342
    %v1743 = vpack.c.b16 %v1351, %v1343
    %v1744 = vpack.c.b16 %v1352, %v1344
    %v1745 = vpack.c.b16 %v1353, %v1345
    %v1746 = vpack.c.b16 %v1362, %v1354
    %v1747 = vpack.c.b16 %v1363, %v1355
    %v1748 = vpack.c.b16 %v1364, %v1356
    %v1749 = vpack.c.b16 %v1365, %v1357
    %v1750 = vpack.c.b16 %v1366, %v1358
    %v1751 = vpack.c.b16 %v1367, %v1359
    %v1752 = vpack.c.b16 %v1368, %v1360
    %v1753 = vpack.c.b16 %v1369, %v1361
    %v1754 = vpack.c.b16 %v1378, %v1370
    %v1755 = vpack.c.b16 %v1379, %v1371
    %v1756 = vpack.c.b16 %v1380, %v1372
    %v1757 = vpack.c.b16 %v1381, %v1373
    %v1758 = vpack.c.b16 %v1382, %v1374
    %v1759 = vpack.c.b16 %v1383, %v1375
    %v1760 = vpack.c.b16 %v1384, %v1376
    %v1761 = vpack.c.b16 %v1385, %v1377
    %v1762 = vpack.c.b16 %v1394, %v1386
    %v1763 = vpack.c.b16 %v1395, %v1387
    %v1764 = vpack.c.b16 %v1396, %v1388
    %v1765 = vpack.c.b16 %v1397, %v1389
    %v1766 = vpack.c.b16 %v1398, %v1390
    %v1767 = vpack.c.b16 %v1399, %v1391
    %v1768 = vpack.c.b16 %v1400, %v1392
    %v1769 = vpack.c.b16 %v1401, %v1393
    %v1770 = vpack.c.b16 %v1410, %v1402
    %v1771 = vpack.c.b16 %v1411, %v1403
    %v1772 = vpack.c.b16 %v1412, %v1404
    %v1773 = vpack.c.b16 %v1413, %v1405
    %v1774 = vpack.c.b16 %v1414, %v1406
    %v1775 = vpack.c.b16 %v1415, %v1407
    %v1776 = vpack.c.b16 %v1416, %v1408
    %v1777 = vpack.c.b16 %v1417, %v1409
    %v1778 = vpack.c.b16 %v1426, %v1418
    %v1779 = vpack.c.b16 %v1427, %v1419
    %v1780 = vpack.c.b16 %v1428, %v1420
    %v1781 = vpack.c.b16 %v1429, %v1421
    %v1782 = vpack.c.b16 %v1430, %v1422
    %v1783 = vpack.c.b16 %v1431, %v1423
    %v1784 = vpack.c.b16 %v1432, %v1424
    %v1785 = vpack.c.b16 %v1433, %v1425
    %v1786 = vpack.c.b16 %v1442, %v1434
    %v1787 = vpack.c.b16 %v1443, %v1435
    %v1788 = vpack.c.b16 %v1444, %v1436
    %v1789 = vpack.c.b16 %v1445, %v1437
    %v1790 = vpack.c.b16 %v1446, %v1438
    %v1791 = vpack.c.b16 %v1447, %v1439
    %v1792 = vpack.c.b16 %v1448, %v1440
    %v1793 = vpack.c.b16 %v1449, %v1441
    %v1794 = vpack.c.b16 %v1458, %v1450
    %v1795 = vpack.c.b16 %v1459, %v1451
    %v1796 = vpack.c.b16 %v1460, %v1452
    %v1797 = vpack.c.b16 %v1461, %v1453
    %v1798 = vpack.c.b16 %v1462, %v1454
    %v1799 = vpack.c.b16 %v1463, %v1455
    %v1800 = vpack.c.b16 %v1464, %v1456
    %v1801 = vpack.c.b16 %v1465, %v1457
    %v1802 = vpack.c.b16 %v1474, %v1466
    %v1803 = vpack.c.b16 %v1475, %v1467
    %v1804 = vpack.c.b16 %v1476, %v1468
    %v1805 = vpack.c.b16 %v1477, %v1469
    %v1806 = vpack.c.b16 %v1478, %v1470
    %v1807 = vpack.c.b16 %v1479, %v1471
    %v1808 = vpack.c.b16 %v1480, %v1472
    %v1809 = vpack.c.b16 %v1481, %v1473
    %v1810 = vpack.c.b16 %v1490, %v1482
    %v1811 = vpack.c.b16 %v1491, %v1483
    %v1812 = vpack.c.b16 %v1492, %v1484
    %v1813 = vpack.c.b16 %v1493, %v1485
    %v1814 = vpack.c.b16 %v1494, %v1486
    %v1815 = vpack.c.b16 %v1495, %v1487
    %v1816 = vpack.c.b16 %v1496, %v1488
    %v1817 = vpack.c.b16 %v1497, %v1489
    %v1818 = vpack.c.b16 %v1506, %v1498
    %v1819 = vpack.c.b16 %v1507, %v1499
    %v1820 = vpack.c.b16 %v1508, %v1500
    %v1821 = vpack.c.b16 %v1509, %v1501
    %v1822 = vpack.c.b16 %v1510, %v1502
    %v1823 = vpack.c.b16 %v1511, %v1503
    %v1824 = vpack.c.b16 %v1512, %v1504
    %v1825 = vpack.c.b16 %v1513, %v1505
    %v1826 = vpack.c.b16 %v1522, %v1514
    %v1827 = vpack.c.b16 %v1523, %v1515
    %v1828 = vpack.c.b16 %v1524, %v1516
    %v1829 = vpack.c.b16 %v1525, %v1517
    %v1830 = vpack.c.b16 %v1526, %v1518
    %v1831 = vpack.c.b16 %v1527, %v1519
    %v1832 = vpack.c.b16 %v1528, %v1520
    %v1833 = vpack.c.b16 %v1529, %v1521
    %v1834 = vpack.c.b16 %v1538, %v1530
    %v1835 = vpack.c.b16 %v1539, %v1531
    %v1836 = vpack.c.b16 %v1540, %v1532
    %v1837 = vpack.c.b16 %v1541, %v1533
    %v1838 = vpack.c.b16 %v1542, %v1534
    %v1839 = vpack.c.b16 %v1543, %v1535
    %v1840 = vpack.c.b16 %v1544, %v1536
    %v1841 = vpack.c.b16 %v1545, %v1537
    %v1842 = vpack.c.b16 %v1554, %v1546
    %v1843 = vpack.c.b16 %v1555, %v1547
    %v1844 = vpack.c.b16 %v1556, %v1548
    %v1845 = vpack.c.b16 %v1557, %v1549
    %v1846 = vpack.c.b16 %v1558, %v1550
    %v1847 = vpack.c.b16 %v1559, %v1551
    %v1848 = vpack.c.b16 %v1560, %v1552
    %v1849 = vpack.c.b16 %v1561, %v1553
    %v1850 = vpack.c.b16 %v1570, %v1562
    %v1851 = vpack.c.b16 %v1571, %v1563
    %v1852 = vpack.c.b16 %v1572, %v1564
    %v1853 = vpack.c.b16 %v1573, %v1565
    %v1854 = vpack.c.b16 %v1574, %v1566
    %v1855 = vpack.c.b16 %v1575, %v1567
    %v1856 = vpack.c.b16 %v1576, %v1568
    %v1857 = vpack.c.b16 %v1577, %v1569
    %v1858 = vpack.c.b16 %v1586, %v1578
    %v1859 = vpack.c.b16 %v1587, %v1579
    %v1860 = vpack.c.b16 %v1588, %v1580
    %v1861 = vpack.c.b16 %v1589, %v1581
    %v1862 = vpack.c.b16 %v1590, %v1582
    %v1863 = vpack.c.b16 %v1591, %v1583
    %v1864 = vpack.c.b16 %v1592, %v1584
    %v1865 = vpack.c.b16 %v1593, %v1585
    %v1866 = vpack.c.b16 %v1602, %v1594
    %v1867 = vpack.c.b16 %v1603, %v1595
    %v1868 = vpack.c.b16 %v1604, %v1596
    %v1869 = vpack.c.b16 %v1605, %v1597
    %v1870 = vpack.c.b16 %v1606, %v1598
    %v1871 = vpack.c.b16 %v1607, %v1599
    %v1872 = vpack.c.b16 %v1608, %v1600
    %v1873 = vpack.c.b16 %v1609, %v1601
    %v1874 = vpack.c.b16 %v1618, %v1610
    %v1875 = vpack.c.b16 %v1619, %v1611
    %v1876 = vpack.c.b16 %v1620, %v1612
    %v1877 = vpack.c.b16 %v1621, %v1613
    %v1878 = vpack.c.b16 %v1622, %v1614
    %v1879 = vpack.c.b16 %v1623, %v1615
    %v1880 = vpack.c.b16 %v1624, %v1616
    %v1881 = vpack.c.b16 %v1625, %v1617
    %2138 = vmatprep.subr.bf16.mxu0 %v1683
    %2139 = vmatpush1.bf16.msra.mxu0 %v1682
    %2140 = vmatprep.subr.bf16.mxu0 %v1675
    %2141 = vmatpush1.bf16.msra.mxu0 %v1674
    %2142 = vmatprep.subr.bf16.mxu0 %v1667
    %2143 = vmatpush1.bf16.msra.mxu0 %v1666
    %2144 = vmatprep.subr.bf16.mxu0 %v1659
    %2145 = vmatpush1.bf16.msra.mxu0 %v1658
    %2146 = vmatprep.subr.bf16.mxu0 %v1651
    %2147 = vmatpush1.bf16.msra.mxu0 %v1650
    %2148 = vmatprep.subr.bf16.mxu0 %v1643
    %2149 = vmatpush1.bf16.msra.mxu0 %v1642
    %2150 = vmatprep.subr.bf16.mxu0 %v1635
    %2151 = vmatpush1.bf16.msra.mxu0 %v1634
    %2152 = vmatprep.subr.bf16.mxu0 %v1627
    %2153 = vmatpush1.bf16.msra.mxu0 %v1626
    %2154 = vmatprep.subr.bf16.mxu0 %v1747
    %2155 = vmatpush2.bf16.msra.mxu0 %v1746
    %2156 = vmatprep.subr.bf16.mxu0 %v1739
    %2157 = vmatpush2.bf16.msra.mxu0 %v1738
    %2158 = vmatprep.subr.bf16.mxu0 %v1731
    %2159 = vmatpush2.bf16.msra.mxu0 %v1730
    %2160 = vmatprep.subr.bf16.mxu0 %v1723
    %2161 = vmatpush2.bf16.msra.mxu0 %v1722
    %2162 = vmatprep.subr.bf16.mxu0 %v1715
    %2163 = vmatpush2.bf16.msra.mxu0 %v1714
    %2164 = vmatprep.subr.bf16.mxu0 %v1707
    %2165 = vmatpush2.bf16.msra.mxu0 %v1706
    %2166 = vmatprep.subr.bf16.mxu0 %v1699
    %2167 = vmatpush2.bf16.msra.mxu0 %v1698
    %2168 = vmatprep.subr.bf16.mxu0 %v1691
    %2169 = vmatpush2.bf16.msra.mxu0 %v1690
    %2170 = vmatprep.mubr.bf16.mxu0 %v557
    %2171 = vmatmul.mubr.bf16.gmra.mxu0 %v556
    %v2172 = vpop.f32.mrf.mxu0
    %v2173 = vadd.f32 %v821, %v2172
    %v2174 = vpop.f32.mrf.mxu0
    %v2175 = vadd.f32 %v825, %v2174
    %v2176 = vpop.f32.mrf.mxu0
    %v2177 = vpop.f32.mrf.mxu0
    %2178 = vdwg.mxu0
    %2179 = vmatprep.subr.bf16.mxu0 %v1811
    %2180 = vmatpush1.bf16.msra.mxu0 %v1810
    %2181 = vmatprep.subr.bf16.mxu0 %v1803
    %2182 = vmatpush1.bf16.msra.mxu0 %v1802
    %2183 = vmatprep.subr.bf16.mxu0 %v1795
    %2184 = vmatpush1.bf16.msra.mxu0 %v1794
    %2185 = vmatprep.subr.bf16.mxu0 %v1787
    %2186 = vmatpush1.bf16.msra.mxu0 %v1786
    %2187 = vmatprep.subr.bf16.mxu0 %v1779
    %2188 = vmatpush1.bf16.msra.mxu0 %v1778
    %2189 = vmatprep.subr.bf16.mxu0 %v1771
    %2190 = vmatpush1.bf16.msra.mxu0 %v1770
    %2191 = vmatprep.subr.bf16.mxu0 %v1763
    %2192 = vmatpush1.bf16.msra.mxu0 %v1762
    %2193 = vmatprep.subr.bf16.mxu0 %v1755
    %2194 = vmatpush1.bf16.msra.mxu0 %v1754
    %2195 = vmatprep.subr.bf16.mxu0 %v1875
    %2196 = vmatpush2.bf16.msra.mxu0 %v1874
    %2197 = vmatprep.subr.bf16.mxu0 %v1867
    %2198 = vmatpush2.bf16.msra.mxu0 %v1866
    %2199 = vmatprep.subr.bf16.mxu0 %v1859
    %2200 = vmatpush2.bf16.msra.mxu0 %v1858
    %2201 = vmatprep.subr.bf16.mxu0 %v1851
    %2202 = vmatpush2.bf16.msra.mxu0 %v1850
    %2203 = vmatprep.subr.bf16.mxu0 %v1843
    %2204 = vmatpush2.bf16.msra.mxu0 %v1842
    %2205 = vmatprep.subr.bf16.mxu0 %v1835
    %2206 = vmatpush2.bf16.msra.mxu0 %v1834
    %2207 = vmatprep.subr.bf16.mxu0 %v1827
    %2208 = vmatpush2.bf16.msra.mxu0 %v1826
    %2209 = vmatprep.subr.bf16.mxu0 %v1819
    %2210 = vmatpush2.bf16.msra.mxu0 %v1818
    %2211 = vmatprep.mubr.bf16.mxu0 %v559
    %2212 = vmatmul.mubr.bf16.gmra.mxu0 %v558
    %v2213 = vpop.f32.mrf.mxu0
    %v2214 = vadd.f32 %v2173, %v2213
    %v2215 = vpop.f32.mrf.mxu0
    %v2216 = vadd.f32 %v2175, %v2215
    %v2217 = vpop.f32.mrf.mxu0
    %v2218 = vpop.f32.mrf.mxu0
    %2219 = vdwg.mxu0
    %2220 = vmatprep.subr.bf16.mxu0 %v1685
    %2221 = vmatpush1.bf16.msra.mxu0 %v1684
    %2222 = vmatprep.subr.bf16.mxu0 %v1677
    %2223 = vmatpush1.bf16.msra.mxu0 %v1676
    %2224 = vmatprep.subr.bf16.mxu0 %v1669
    %2225 = vmatpush1.bf16.msra.mxu0 %v1668
    %2226 = vmatprep.subr.bf16.mxu0 %v1661
    %2227 = vmatpush1.bf16.msra.mxu0 %v1660
    %2228 = vmatprep.subr.bf16.mxu0 %v1653
    %2229 = vmatpush1.bf16.msra.mxu0 %v1652
    %2230 = vmatprep.subr.bf16.mxu0 %v1645
    %2231 = vmatpush1.bf16.msra.mxu0 %v1644
    %2232 = vmatprep.subr.bf16.mxu0 %v1637
    %2233 = vmatpush1.bf16.msra.mxu0 %v1636
    %2234 = vmatprep.subr.bf16.mxu0 %v1629
    %2235 = vmatpush1.bf16.msra.mxu0 %v1628
    %2236 = vmatprep.subr.bf16.mxu0 %v1749
    %2237 = vmatpush2.bf16.msra.mxu0 %v1748
    %2238 = vmatprep.subr.bf16.mxu0 %v1741
    %2239 = vmatpush2.bf16.msra.mxu0 %v1740
    %2240 = vmatprep.subr.bf16.mxu0 %v1733
    %2241 = vmatpush2.bf16.msra.mxu0 %v1732
    %2242 = vmatprep.subr.bf16.mxu0 %v1725
    %2243 = vmatpush2.bf16.msra.mxu0 %v1724
    %2244 = vmatprep.subr.bf16.mxu0 %v1717
    %2245 = vmatpush2.bf16.msra.mxu0 %v1716
    %2246 = vmatprep.subr.bf16.mxu0 %v1709
    %2247 = vmatpush2.bf16.msra.mxu0 %v1708
    %2248 = vmatprep.subr.bf16.mxu0 %v1701
    %2249 = vmatpush2.bf16.msra.mxu0 %v1700
    %2250 = vmatprep.subr.bf16.mxu0 %v1693
    %2251 = vmatpush2.bf16.msra.mxu0 %v1692
    %2252 = vmatprep.mubr.bf16.mxu0 %v557
    %2253 = vmatmul.mubr.bf16.gmra.mxu0 %v556
    %v2254 = vpop.f32.mrf.mxu0
    %v2255 = vadd.f32 %v829, %v2254
    %v2256 = vpop.f32.mrf.mxu0
    %v2257 = vadd.f32 %v833, %v2256
    %v2258 = vpop.f32.mrf.mxu0
    %v2259 = vpop.f32.mrf.mxu0
    %2260 = vdwg.mxu0
    %2261 = vmatprep.subr.bf16.mxu0 %v1813
    %2262 = vmatpush1.bf16.msra.mxu0 %v1812
    %2263 = vmatprep.subr.bf16.mxu0 %v1805
    %2264 = vmatpush1.bf16.msra.mxu0 %v1804
    %2265 = vmatprep.subr.bf16.mxu0 %v1797
    %2266 = vmatpush1.bf16.msra.mxu0 %v1796
    %2267 = vmatprep.subr.bf16.mxu0 %v1789
    %2268 = vmatpush1.bf16.msra.mxu0 %v1788
    %2269 = vmatprep.subr.bf16.mxu0 %v1781
    %2270 = vmatpush1.bf16.msra.mxu0 %v1780
    %2271 = vmatprep.subr.bf16.mxu0 %v1773
    %2272 = vmatpush1.bf16.msra.mxu0 %v1772
    %2273 = vmatprep.subr.bf16.mxu0 %v1765
    %2274 = vmatpush1.bf16.msra.mxu0 %v1764
    %2275 = vmatprep.subr.bf16.mxu0 %v1757
    %2276 = vmatpush1.bf16.msra.mxu0 %v1756
    %2277 = vmatprep.subr.bf16.mxu0 %v1877
    %2278 = vmatpush2.bf16.msra.mxu0 %v1876
    %2279 = vmatprep.subr.bf16.mxu0 %v1869
    %2280 = vmatpush2.bf16.msra.mxu0 %v1868
    %2281 = vmatprep.subr.bf16.mxu0 %v1861
    %2282 = vmatpush2.bf16.msra.mxu0 %v1860
    %2283 = vmatprep.subr.bf16.mxu0 %v1853
    %2284 = vmatpush2.bf16.msra.mxu0 %v1852
    %2285 = vmatprep.subr.bf16.mxu0 %v1845
    %2286 = vmatpush2.bf16.msra.mxu0 %v1844
    %2287 = vmatprep.subr.bf16.mxu0 %v1837
    %2288 = vmatpush2.bf16.msra.mxu0 %v1836
    %2289 = vmatprep.subr.bf16.mxu0 %v1829
    %2290 = vmatpush2.bf16.msra.mxu0 %v1828
    %2291 = vmatprep.subr.bf16.mxu0 %v1821
    %2292 = vmatpush2.bf16.msra.mxu0 %v1820
    %2293 = vmatprep.mubr.bf16.mxu0 %v559
    %2294 = vmatmul.mubr.bf16.gmra.mxu0 %v558
    %v2295 = vpop.f32.mrf.mxu0
    %v2296 = vadd.f32 %v2255, %v2295
    %v2297 = vpop.f32.mrf.mxu0
    %v2298 = vadd.f32 %v2257, %v2297
    %v2299 = vpop.f32.mrf.mxu0
    %v2300 = vpop.f32.mrf.mxu0
    %2301 = vdwg.mxu0
    %2302 = vmatprep.subr.bf16.mxu0 %v1687
    %2303 = vmatpush1.bf16.msra.mxu0 %v1686
    %2304 = vmatprep.subr.bf16.mxu0 %v1679
    %2305 = vmatpush1.bf16.msra.mxu0 %v1678
    %2306 = vmatprep.subr.bf16.mxu0 %v1671
    %2307 = vmatpush1.bf16.msra.mxu0 %v1670
    %2308 = vmatprep.subr.bf16.mxu0 %v1663
    %2309 = vmatpush1.bf16.msra.mxu0 %v1662
    %2310 = vmatprep.subr.bf16.mxu0 %v1655
    %2311 = vmatpush1.bf16.msra.mxu0 %v1654
    %2312 = vmatprep.subr.bf16.mxu0 %v1647
    %2313 = vmatpush1.bf16.msra.mxu0 %v1646
    %2314 = vmatprep.subr.bf16.mxu0 %v1639
    %2315 = vmatpush1.bf16.msra.mxu0 %v1638
    %2316 = vmatprep.subr.bf16.mxu0 %v1631
    %2317 = vmatpush1.bf16.msra.mxu0 %v1630
    %2318 = vmatprep.subr.bf16.mxu0 %v1751
    %2319 = vmatpush2.bf16.msra.mxu0 %v1750
    %2320 = vmatprep.subr.bf16.mxu0 %v1743
    %2321 = vmatpush2.bf16.msra.mxu0 %v1742
    %2322 = vmatprep.subr.bf16.mxu0 %v1735
    %2323 = vmatpush2.bf16.msra.mxu0 %v1734
    %2324 = vmatprep.subr.bf16.mxu0 %v1727
    %2325 = vmatpush2.bf16.msra.mxu0 %v1726
    %2326 = vmatprep.subr.bf16.mxu0 %v1719
    %2327 = vmatpush2.bf16.msra.mxu0 %v1718
    %2328 = vmatprep.subr.bf16.mxu0 %v1711
    %2329 = vmatpush2.bf16.msra.mxu0 %v1710
    %2330 = vmatprep.subr.bf16.mxu0 %v1703
    %2331 = vmatpush2.bf16.msra.mxu0 %v1702
    %2332 = vmatprep.subr.bf16.mxu0 %v1695
    %2333 = vmatpush2.bf16.msra.mxu0 %v1694
    %2334 = vmatprep.mubr.bf16.mxu0 %v557
    %2335 = vmatmul.mubr.bf16.gmra.mxu0 %v556
    %v2336 = vpop.f32.mrf.mxu0
    %v2337 = vadd.f32 %v837, %v2336
    %v2338 = vpop.f32.mrf.mxu0
    %v2339 = vadd.f32 %v841, %v2338
    %v2340 = vpop.f32.mrf.mxu0
    %v2341 = vpop.f32.mrf.mxu0
    %2342 = vdwg.mxu0
    %2343 = vmatprep.subr.bf16.mxu0 %v1815
    %2344 = vmatpush1.bf16.msra.mxu0 %v1814
    %2345 = vmatprep.subr.bf16.mxu0 %v1807
    %2346 = vmatpush1.bf16.msra.mxu0 %v1806
    %2347 = vmatprep.subr.bf16.mxu0 %v1799
    %2348 = vmatpush1.bf16.msra.mxu0 %v1798
    %2349 = vmatprep.subr.bf16.mxu0 %v1791
    %2350 = vmatpush1.bf16.msra.mxu0 %v1790
    %2351 = vmatprep.subr.bf16.mxu0 %v1783
    %2352 = vmatpush1.bf16.msra.mxu0 %v1782
    %2353 = vmatprep.subr.bf16.mxu0 %v1775
    %2354 = vmatpush1.bf16.msra.mxu0 %v1774
    %2355 = vmatprep.subr.bf16.mxu0 %v1767
    %2356 = vmatpush1.bf16.msra.mxu0 %v1766
    %2357 = vmatprep.subr.bf16.mxu0 %v1759
    %2358 = vmatpush1.bf16.msra.mxu0 %v1758
    %2359 = vmatprep.subr.bf16.mxu0 %v1879
    %2360 = vmatpush2.bf16.msra.mxu0 %v1878
    %2361 = vmatprep.subr.bf16.mxu0 %v1871
    %2362 = vmatpush2.bf16.msra.mxu0 %v1870
    %2363 = vmatprep.subr.bf16.mxu0 %v1863
    %2364 = vmatpush2.bf16.msra.mxu0 %v1862
    %2365 = vmatprep.subr.bf16.mxu0 %v1855
    %2366 = vmatpush2.bf16.msra.mxu0 %v1854
    %2367 = vmatprep.subr.bf16.mxu0 %v1847
    %2368 = vmatpush2.bf16.msra.mxu0 %v1846
    %2369 = vmatprep.subr.bf16.mxu0 %v1839
    %2370 = vmatpush2.bf16.msra.mxu0 %v1838
    %2371 = vmatprep.subr.bf16.mxu0 %v1831
    %2372 = vmatpush2.bf16.msra.mxu0 %v1830
    %2373 = vmatprep.subr.bf16.mxu0 %v1823
    %2374 = vmatpush2.bf16.msra.mxu0 %v1822
    %2375 = vmatprep.mubr.bf16.mxu0 %v559
    %2376 = vmatmul.mubr.bf16.gmra.mxu0 %v558
    %v2377 = vpop.f32.mrf.mxu0
    %v2378 = vadd.f32 %v2337, %v2377
    %v2379 = vpop.f32.mrf.mxu0
    %v2380 = vadd.f32 %v2339, %v2379
    %v2381 = vpop.f32.mrf.mxu0
    %v2382 = vpop.f32.mrf.mxu0
    %2383 = vdwg.mxu0
    %2384 = vmatprep.subr.bf16.mxu0 %v1689
    %2385 = vmatpush1.bf16.msra.mxu0 %v1688
    %2386 = vmatprep.subr.bf16.mxu0 %v1681
    %2387 = vmatpush1.bf16.msra.mxu0 %v1680
    %2388 = vmatprep.subr.bf16.mxu0 %v1673
    %2389 = vmatpush1.bf16.msra.mxu0 %v1672
    %2390 = vmatprep.subr.bf16.mxu0 %v1665
    %2391 = vmatpush1.bf16.msra.mxu0 %v1664
    %2392 = vmatprep.subr.bf16.mxu0 %v1657
    %2393 = vmatpush1.bf16.msra.mxu0 %v1656
    %2394 = vmatprep.subr.bf16.mxu0 %v1649
    %2395 = vmatpush1.bf16.msra.mxu0 %v1648
    %2396 = vmatprep.subr.bf16.mxu0 %v1641
    %2397 = vmatpush1.bf16.msra.mxu0 %v1640
    %2398 = vmatprep.subr.bf16.mxu0 %v1633
    %2399 = vmatpush1.bf16.msra.mxu0 %v1632
    %2400 = vmatprep.subr.bf16.mxu0 %v1753
    %2401 = vmatpush2.bf16.msra.mxu0 %v1752
    %2402 = vmatprep.subr.bf16.mxu0 %v1745
    %2403 = vmatpush2.bf16.msra.mxu0 %v1744
    %2404 = vmatprep.subr.bf16.mxu0 %v1737
    %2405 = vmatpush2.bf16.msra.mxu0 %v1736
    %2406 = vmatprep.subr.bf16.mxu0 %v1729
    %2407 = vmatpush2.bf16.msra.mxu0 %v1728
    %2408 = vmatprep.subr.bf16.mxu0 %v1721
    %2409 = vmatpush2.bf16.msra.mxu0 %v1720
    %2410 = vmatprep.subr.bf16.mxu0 %v1713
    %2411 = vmatpush2.bf16.msra.mxu0 %v1712
    %2412 = vmatprep.subr.bf16.mxu0 %v1705
    %2413 = vmatpush2.bf16.msra.mxu0 %v1704
    %2414 = vmatprep.subr.bf16.mxu0 %v1697
    %2415 = vmatpush2.bf16.msra.mxu0 %v1696
    %2416 = vmatprep.mubr.bf16.mxu0 %v557
    %2417 = vmatmul.mubr.bf16.gmra.mxu0 %v556
    %v2418 = vpop.f32.mrf.mxu0
    %v2419 = vadd.f32 %v845, %v2418
    %v2420 = vpop.f32.mrf.mxu0
    %v2421 = vadd.f32 %v849, %v2420
    %v2422 = vpop.f32.mrf.mxu0
    %v2423 = vpop.f32.mrf.mxu0
    %2424 = vdwg.mxu0
    %2425 = vmatprep.subr.bf16.mxu0 %v1817
    %2426 = vmatpush1.bf16.msra.mxu0 %v1816
    %2427 = vmatprep.subr.bf16.mxu0 %v1809
    %2428 = vmatpush1.bf16.msra.mxu0 %v1808
    %2429 = vmatprep.subr.bf16.mxu0 %v1801
    %2430 = vmatpush1.bf16.msra.mxu0 %v1800
    %2431 = vmatprep.subr.bf16.mxu0 %v1793
    %2432 = vmatpush1.bf16.msra.mxu0 %v1792
    %2433 = vmatprep.subr.bf16.mxu0 %v1785
    %2434 = vmatpush1.bf16.msra.mxu0 %v1784
    %2435 = vmatprep.subr.bf16.mxu0 %v1777
    %2436 = vmatpush1.bf16.msra.mxu0 %v1776
    %2437 = vmatprep.subr.bf16.mxu0 %v1769
    %2438 = vmatpush1.bf16.msra.mxu0 %v1768
    %2439 = vmatprep.subr.bf16.mxu0 %v1761
    %2440 = vmatpush1.bf16.msra.mxu0 %v1760
    %2441 = vmatprep.subr.bf16.mxu0 %v1881
    %2442 = vmatpush2.bf16.msra.mxu0 %v1880
    %2443 = vmatprep.subr.bf16.mxu0 %v1873
    %2444 = vmatpush2.bf16.msra.mxu0 %v1872
    %2445 = vmatprep.subr.bf16.mxu0 %v1865
    %2446 = vmatpush2.bf16.msra.mxu0 %v1864
    %2447 = vmatprep.subr.bf16.mxu0 %v1857
    %2448 = vmatpush2.bf16.msra.mxu0 %v1856
    %2449 = vmatprep.subr.bf16.mxu0 %v1849
    %2450 = vmatpush2.bf16.msra.mxu0 %v1848
    %2451 = vmatprep.subr.bf16.mxu0 %v1841
    %2452 = vmatpush2.bf16.msra.mxu0 %v1840
    %2453 = vmatprep.subr.bf16.mxu0 %v1833
    %2454 = vmatpush2.bf16.msra.mxu0 %v1832
    %2455 = vmatprep.subr.bf16.mxu0 %v1825
    %2456 = vmatpush2.bf16.msra.mxu0 %v1824
    %2457 = vmatprep.mubr.bf16.mxu0 %v559
    %2458 = vmatmul.mubr.bf16.gmra.mxu0 %v558
    %v2459 = vpop.f32.mrf.mxu0
    %v2460 = vadd.f32 %v2419, %v2459
    %v2461 = vpop.f32.mrf.mxu0
    %v2462 = vadd.f32 %v2421, %v2461
    %v2463 = vpop.f32.mrf.mxu0
    %v2464 = vpop.f32.mrf.mxu0
    %2465 = vdwg.mxu0
    %v2466 = vmax.f32 %v2214, 0.0
    %v2467 = vmax.f32 %v2216, 0.0
    %v2468 = vmax.f32 %v2296, 0.0
    %v2469 = vmax.f32 %v2298, 0.0
    %v2470 = vmax.f32 %v2378, 0.0
    %v2471 = vmax.f32 %v2380, 0.0
    %v2472 = vmax.f32 %v2460, 0.0
    %v2473 = vmax.f32 %v2462, 0.0
    %v2482 = vcombine.low %v2466, %v2467
    %v2483 = vcombine.low %v2468, %v2469
    %v2485 = vunpack.c.l.s4 1983009808
    %v2486 = vunpack.c.0.s8 %v2485
    %v2487 = vlaneseq
    %v2488 = vshrl.u32 %v2487, 7
    %v2489 = vsub.s32 %v2486, %v2488
    %v2490 = vrot.slane %v2482, %v2489
    %v2492 = vunpack.c.l.s4 1983009808
    %v2493 = vunpack.c.0.s8 %v2492
    %v2494 = vlaneseq
    %v2495 = vshrl.u32 %v2494, 7
    %v2496 = vsub.s32 %v2493, %v2495
    %v2497 = vrot.slane %v2483, %v2496
    %v2498 = vcombine.low %v2490, %v2497
    %v2499 = vcombine.low %v2470, %v2471
    %v2500 = vcombine.low %v2472, %v2473
    %v2502 = vunpack.c.l.s4 1983009808
    %v2503 = vunpack.c.0.s8 %v2502
    %v2504 = vlaneseq
    %v2505 = vshrl.u32 %v2504, 7
    %v2506 = vsub.s32 %v2503, %v2505
    %v2507 = vrot.slane %v2499, %v2506
    %v2509 = vunpack.c.l.s4 1983009808
    %v2510 = vunpack.c.0.s8 %v2509
    %v2511 = vlaneseq
    %v2512 = vshrl.u32 %v2511, 7
    %v2513 = vsub.s32 %v2510, %v2512
    %v2514 = vrot.slane %v2500, %v2513
    %v2515 = vcombine.low %v2507, %v2514
    %2518 = vst [vmem:[#allocation11] sm:$0xff] %v2498
    %2519 = vst [vmem:[#allocation11 + $0x8] sm:$0xff] %v2515
    // Predicated region
    $region58: #{tpu_custom_call.1} parent=1 // pred_check
      _
    $region59: #{tpu_custom_call.1} parent=1 // pred_check_branch
      %2521 = sbr.rel (0) target = $region61
    $region60: #{tpu_custom_call.1} parent=1 // pred_region
      %s2523 = ssub.s32 256, 256
      %2524 = vsyncadd [#allocation4], %s2523
      %s2526 = sshll.u32 [#allocation11], 4
      %s2527 = int_to_ptr.vmem [resolvable:$true] %s2526
      %2529 = dma.vmem_to_hbm [thread:$0]  %s2527, 256, %s9, [#allocation4]
    $region61: #{tpu_custom_call.1} parent=1 // pred_fallthru
      _
    // Predicated region
    $region62: #{tpu_custom_call.1} parent=1 // pred_check
      _
    $region63: #{tpu_custom_call.1} parent=1 // pred_check_branch
      %2531 = sbr.rel (0) target = $region65
    $region64: #{tpu_custom_call.1} parent=1 // pred_region
      %2532 = dma.done [#allocation4], 256
    $region65: #{tpu_custom_call.1} parent=1 // pred_fallthru
      _
    %2533 = vsyncpa [#allocation3], 1
    %2534 = vsyncpa [#allocation6], 1
    %2535 = vsyncpa [#allocation9], 1
    %2536 = vsyncpa [#allocation4], 1

</llo_original>
